<compile_context>
chip_gen: v6e
topology: v6e:2x2x1
jax: 0.10.0
libtpu: 0.0.40
codegen_flags: <defaults>
</compile_context>

<pallas_src>
import functools

import numpy as np

import jax
import jax.numpy as jnp
from jax.experimental import pallas as pl
from jax.experimental.pallas import tpu as pltpu


# ----------------------------------------------------------------------------
# Pallas kernel: one grid step == one batch group (bb elements packed on lanes).
# ----------------------------------------------------------------------------
def _scmh_kernel(x_ref, wqvT_ref, bqv_ref, wk_ref, bk_ref, wfT_ref, bf_ref,
                 o_ref, o_scr, *, heads, w, seq, bb):
    hw = heads * w
    x = x_ref[...]                                                # (Cin, bb*N) bf16

    # k projection, channel-major: native (hw, Cin) @ (Cin, bb*N) MXU matmul.
    k_all = jnp.dot(wk_ref[...], x, preferred_element_type=jnp.float32)
    k_all = jnp.maximum(k_all + bk_ref[...], 0.0).astype(jnp.bfloat16)

    # Fused q/v projection, N-major: x^T @ [Wq|Wv]^T.  Contracting lhs dim 0
    # costs at most one x relayout per *step* (vs. two per head before).
    qvT = jax.lax.dot_general(x, wqvT_ref[...], (((0,), (0,)), ((), ())),
                              preferred_element_type=jnp.float32)  # (bb*N, 2hw)
    qvT = jnp.maximum(qvT + bqv_ref[...], 0.0).astype(jnp.bfloat16)

    # Per-(batch, head) attention.  All slices are static and 8-aligned; both
    # dots are MXU-native (lhs contracts its last dim, rhs its first dim).
    for b in range(bb):                                           # static unroll
        r0 = b * seq
        for m in range(heads):                                    # heads = 2*psi-1
            c0 = m * w
            qT_m = qvT[r0:r0 + seq, c0:c0 + w]                    # (N, w) bf16
            vT_m = qvT[r0:r0 + seq, hw + c0:hw + c0 + w]          # (N, w) bf16
            k_m = k_all[c0:c0 + w, r0:r0 + seq]                   # (w, N) bf16

            a = jnp.dot(qT_m, k_m, preferred_element_type=jnp.float32)  # (N, N)
            a = a - jnp.max(a, axis=-1, keepdims=True)
            e = jnp.exp(a)
            p = e * pl.reciprocal(jnp.sum(e, axis=-1, keepdims=True), approx=True)
            # o^T[i, c] = sum_j p[i, j] * v[c, j]  -> aligned scratch store.
            o_scr[r0:r0 + seq, c0:c0 + w] = jnp.dot(
                p.astype(jnp.bfloat16), vT_m, preferred_element_type=jnp.float32)

    # TODO(synk): for large N the per-head (N, N) scores need an online-softmax
    # kv loop (lax.fori_loop to bound live ranges) and an explicit
    # vmem_limit_bytes -- mandatory on v7x's 64 MiB VMEM; unnecessary here.

    # Single K = heads*w fusion matmul over the scratch (one cast, no concat).
    # TODO(synk): on v7x, accumulating wf[:, m*w:(m+1)*w] @ o_m per head in an
    # f32 accumulator (MRB in-place accumulation) avoids this intermediate.
    o_all = o_scr[...].astype(jnp.bfloat16)                       # (bb*N, hw)
    out = jnp.dot(o_all, wfT_ref[...], preferred_element_type=jnp.float32)
    out = jnp.maximum(out + bf_ref[...], 0.0)                     # (bb*N, C)
    # Single transpose at writeback -> lane-dense (C, bb*N) output block.
    o_ref[...] = out.T.astype(o_ref.dtype)


# ----------------------------------------------------------------------------
# Wrapper: folds eval-mode BN into weights, pre-gathers head windows, packs the
# batch along lanes and calls the kernel once per batch group.
# ----------------------------------------------------------------------------
def shifted_channel_multihead(x_ncl, params, *, psi=4, eps=1e-5):
    """x_ncl: (B, C_in, N) float32 (PyTorch NCL).  Returns (B, C_out, N) f32."""
    B, Cin, N = x_ncl.shape
    C = params["wq"].shape[0]
    w = C // psi
    d = w // 2
    heads = 2 * psi - 1
    hw = heads * w

    # Tile-alignment assumptions of the in-kernel head slicing.
    assert w % 8 == 0, "C // psi must be a multiple of 8 (sublane/lane tiling)"
    assert N % 8 == 0, "sequence length must be a multiple of 8"

    def fold(W, bn_p, conv_bias=None):
        gamma, beta, mean, var = bn_p
        s = gamma / jnp.sqrt(var + eps)
        b = beta - mean * s
        if conv_bias is not None:
            b = b + conv_bias * s
        return W * s[:, None], b

    wq_f, bq_f = fold(params["wq"], params["bn_q"])
    wk_f, bk_f = fold(params["wk"], params["bn_k"])
    wv_f, bv_f = fold(params["wv"], params["bn_v"])
    wf_f, bf_f = fold(params["wf"], params["bn_f"], params["bias_f"])

    # Pre-gather the shifted-channel head windows into the projection weights:
    # head m of the gathered q/k/v occupies rows/cols [m*w, (m+1)*w).
    idx = np.concatenate([np.arange(m * d, m * d + w) for m in range(heads)])
    w_k = wk_f[idx].astype(jnp.bfloat16)                           # (hw, Cin)
    b_k = bk_f[idx][:, None]                                       # (hw, 1)
    w_qvT = jnp.concatenate([wq_f[idx], wv_f[idx]],
                            axis=0).T.astype(jnp.bfloat16)         # (Cin, 2hw)
    b_qv = jnp.concatenate([bq_f[idx], bv_f[idx]])[None, :]        # (1, 2hw)
    w_fT = wf_f.T.astype(jnp.bfloat16)                             # (hw, C)
    b_f = bf_f[None, :]                                            # (1, C)

    # Pack the whole batch along lanes: (B, Cin, N) -> (Cin, B*N), bf16.
    x_p = jnp.transpose(x_ncl, (1, 0, 2)).reshape(Cin, B * N).astype(jnp.bfloat16)

    # One grid step per batch group; take the whole batch per step at these
    # shapes.  (For very large B*N, split into groups with (bb*N) % 128 == 0
    # and keep the grid length even for v7x's two TensorCores.)
    bb = B
    n_groups = B // bb

    kern = functools.partial(_scmh_kernel, heads=heads, w=w, seq=N, bb=bb)
    # Grid-invariant weight/bias operands (block index never changes).
    # NOTE: pipeline_mode=pl.Buffered(1) would skip their double-buffering;
    # negligible at ~10 KB of weights, so left at the default.
    const = lambda shape: pl.BlockSpec(shape, lambda g: tuple(0 for _ in shape))

    out_p = pl.pallas_call(
        kern,
        out_shape=jax.ShapeDtypeStruct((C, B * N), jnp.float32),
        grid_spec=pltpu.PrefetchScalarGridSpec(
            num_scalar_prefetch=0,
            grid=(n_groups,),
            in_specs=[
                pl.BlockSpec((Cin, bb * N), lambda g: (0, g)),     # x, channel-major bf16
                const((Cin, 2 * hw)),                              # [Wq|Wv]^T (bf16)
                const((1, 2 * hw)),                                # q/v bias row
                const((hw, Cin)),                                  # Wk (bf16)
                const((hw, 1)),                                    # k bias column
                const((hw, C)),                                    # Wf^T (bf16)
                const((1, C)),                                     # fusion bias row
            ],
            out_specs=pl.BlockSpec((C, bb * N), lambda g: (0, g)),
            scratch_shapes=[pltpu.VMEM((bb * N, hw), jnp.float32)],
        ),
        compiler_params=pltpu.CompilerParams(
            dimension_semantics=("parallel",)),
    )(x_p, w_qvT, b_qv, w_k, b_k, w_fT, b_f)

    # (C, B*N) -> (B, C, N): single wrapper-side layout fixup.
    return out_p.reshape(C, B, N).transpose(1, 0, 2)


# ----------------------------------------------------------------------------
# Deterministic parameter construction (raw PyTorch-style params).
# ----------------------------------------------------------------------------
def make_params(key, in_channels, out_channels=None, psi=4):
    C = in_channels if out_channels is None else out_channels
    w = C // psi
    heads = 2 * psi - 1
    hw = heads * w
    ks = jax.random.split(key, 9)

    def conv_w(k, cout, cin, scale):
        return scale * jax.random.normal(k, (cout, cin), jnp.float32)

    def bn(k, c):
        kg, kb, km, kv = jax.random.split(k, 4)
        gamma = 1.0 + 0.1 * jax.random.normal(kg, (c,), jnp.float32)
        beta = 0.1 * jax.random.normal(kb, (c,), jnp.float32)
        mean = 0.1 * jax.random.normal(km, (c,), jnp.float32)
        var = 1.0 + 0.1 * jax.random.uniform(kv, (c,), jnp.float32)
        return (gamma, beta, mean, var)

    return {
        "wq": conv_w(ks[0], C, in_channels, 0.2),
        "wk": conv_w(ks[1], C, in_channels, 0.2),
        "wv": conv_w(ks[2], C, in_channels, 0.2),
        "wf": conv_w(ks[3], C, hw, 0.1),
        "bias_f": 0.1 * jax.random.normal(ks[4], (C,), jnp.float32),
        "bn_q": bn(ks[5], C),
        "bn_k": bn(ks[6], C),
        "bn_v": bn(ks[7], C),
        "bn_f": bn(ks[8], C),
    }


# ----------------------------------------------------------------------------
# Pure-JAX f32 reference mirroring the PyTorch forward (NCL, eval-mode BN).
# ----------------------------------------------------------------------------
def ref_forward(x, p, psi=4, eps=1e-5):
    C = p["wq"].shape[0]
    w = C // psi
    d = w // 2
    heads = 2 * psi - 1

    def bn(y, bn_p):
        gamma, beta, mean, var = bn_p
        g = gamma / jnp.sqrt(var + eps)
        return (y - mean[None, :, None]) * g[None, :, None] + beta[None, :, None]

    def branch(W, bn_p):
        y = jnp.einsum("oc,bcn->bon", W, x)
        return jnp.maximum(bn(y, bn_p), 0.0)

    q = branch(p["wq"], p["bn_q"])
    k = branch(p["wk"], p["bn_k"])
    v = branch(p["wv"], p["bn_v"])

    O = []
    for m in range(heads):
        qm = q[:, m * d:m * d + w, :]
        km = k[:, m * d:m * d + w, :]
        vm = v[:, m * d:m * d + w, :]
        a = jnp.einsum("bci,bcj->bij", qm, km)
        a = jax.nn.softmax(a, axis=-1)
        om = jnp.einsum("bij,bcj->bci", a, vm)       # (B, w, N)
        O.append(om)
    O = jnp.concatenate(O, axis=1)                    # (B, heads*w, N)
    y = jnp.einsum("oc,bcn->bon", p["wf"], O) + p["bias_f"][None, :, None]
    return jnp.maximum(bn(y, p["bn_f"]), 0.0)


if __name__ == "__main__":
    key = jax.random.PRNGKey(0)
    k_x, k_p = jax.random.split(key)

    B, C_IN, N, PSI = 2, 32, 16, 4                   # out_channels=None -> 32
    x = jax.random.normal(k_x, (B, C_IN, N), jnp.float32)
    params = make_params(k_p, C_IN, out_channels=None, psi=PSI)

    out = jax.block_until_ready(shifted_channel_multihead(x, params, psi=PSI))
    ref = jax.block_until_ready(ref_forward(x, params, psi=PSI))

    assert out.shape == ref.shape == (B, C_IN, N)
    err = float(jnp.max(jnp.abs(out - ref)))
    # bf16 MXU operands + approx reciprocal => loosened tolerance vs f32 ref.
    assert jnp.allclose(out, ref, atol=3e-2, rtol=3e-2), err

    print("KERNEL_OK")
</pallas_src>

<mosaic_0001>
module attributes {stable_mosaic.version = 11 : i64} {
  func.func @_scmh_kernel(%arg0: i32, %arg1: memref<32x32xbf16, #tpu.memory_space<vmem>>, %arg2: memref<32x112xbf16, #tpu.memory_space<vmem>>, %arg3: memref<1x112xf32, #tpu.memory_space<vmem>>, %arg4: memref<56x32xbf16, #tpu.memory_space<vmem>>, %arg5: memref<56x1xf32, #tpu.memory_space<vmem>>, %arg6: memref<56x32xbf16, #tpu.memory_space<vmem>>, %arg7: memref<1x32xf32, #tpu.memory_space<vmem>>, %arg8: memref<32x32xf32, #tpu.memory_space<vmem>>, %arg9: memref<32x56xf32, #tpu.memory_space<vmem>>) attributes {dimension_semantics = [#tpu.dimension_semantics<parallel>], iteration_bounds = array<i64: 1>, scalar_prefetch = 0 : i64, scratch_operands = 1 : i64, tpu.core_type = #tpu.core_type<tc>, window_params = [{transform_indices = @transform_0, window_bounds = array<i64: 32, 32>}, {pipeline_mode = #tpu.pipeline_mode<synchronous>, transform_indices = @transform_1, window_bounds = array<i64: 32, 112>}, {pipeline_mode = #tpu.pipeline_mode<synchronous>, transform_indices = @transform_2, window_bounds = array<i64: 1, 112>}, {pipeline_mode = #tpu.pipeline_mode<synchronous>, transform_indices = @transform_3, window_bounds = array<i64: 56, 32>}, {pipeline_mode = #tpu.pipeline_mode<synchronous>, transform_indices = @transform_4, window_bounds = array<i64: 56, 1>}, {pipeline_mode = #tpu.pipeline_mode<synchronous>, transform_indices = @transform_5, window_bounds = array<i64: 56, 32>}, {pipeline_mode = #tpu.pipeline_mode<synchronous>, transform_indices = @transform_6, window_bounds = array<i64: 1, 32>}, {transform_indices = @transform_7, window_bounds = array<i64: 32, 32>}]} {
    %c0 = arith.constant 0 : index
    %c0_0 = arith.constant 0 : index
    %0 = vector.load %arg1[%c0, %c0_0] : memref<32x32xbf16, #tpu.memory_space<vmem>>, vector<32x32xbf16>
    %c0_1 = arith.constant 0 : index
    %c0_2 = arith.constant 0 : index
    %1 = vector.load %arg4[%c0_1, %c0_2] : memref<56x32xbf16, #tpu.memory_space<vmem>>, vector<56x32xbf16>
    %cst = arith.constant dense<0.000000e+00> : vector<56x32xf32>
    %2 = tpu.matmul %1, %0, %cst {dimension_numbers = #tpu.dot_dimension_numbers<[1], [0], [0], [1], [0, 0, 1, 1], [], []>} : vector<56x32xbf16>, vector<32x32xbf16>, vector<56x32xf32> -> vector<56x32xf32>
    %c0_3 = arith.constant 0 : index
    %c0_4 = arith.constant 0 : index
    %3 = vector.load %arg5[%c0_3, %c0_4] : memref<56x1xf32, #tpu.memory_space<vmem>>, vector<56x1xf32>
    %4 = vector.broadcast %3 : vector<56x1xf32> to vector<56x32xf32>
    %5 = arith.addf %2, %4 : vector<56x32xf32>
    %cst_5 = arith.constant 0.000000e+00 : f32
    %6 = vector.broadcast %cst_5 : f32 to vector<56x32xf32>
    %7 = arith.maximumf %5, %6 : vector<56x32xf32>
    %8 = arith.truncf %7 : vector<56x32xf32> to vector<56x32xbf16>
    %c0_6 = arith.constant 0 : index
    %c0_7 = arith.constant 0 : index
    %9 = vector.load %arg2[%c0_6, %c0_7] : memref<32x112xbf16, #tpu.memory_space<vmem>>, vector<32x112xbf16>
    %cst_8 = arith.constant dense<0.000000e+00> : vector<32x112xf32>
    %10 = tpu.matmul %0, %9, %cst_8 {dimension_numbers = #tpu.dot_dimension_numbers<[0], [0], [1], [1], [0, 1, 1, 1], [], []>} : vector<32x32xbf16>, vector<32x112xbf16>, vector<32x112xf32> -> vector<32x112xf32>
    %c0_9 = arith.constant 0 : index
    %c0_10 = arith.constant 0 : index
    %11 = vector.load %arg3[%c0_9, %c0_10] : memref<1x112xf32, #tpu.memory_space<vmem>>, vector<1x112xf32>
    %12 = vector.broadcast %11 : vector<1x112xf32> to vector<32x112xf32>
    %13 = arith.addf %10, %12 : vector<32x112xf32>
    %cst_11 = arith.constant 0.000000e+00 : f32
    %14 = vector.broadcast %cst_11 : f32 to vector<32x112xf32>
    %15 = arith.maximumf %13, %14 : vector<32x112xf32>
    %16 = arith.truncf %15 : vector<32x112xf32> to vector<32x112xbf16>
    %17 = vector.extract_strided_slice %16 {offsets = [0, 0], sizes = [16, 8], strides = [1, 1]} : vector<32x112xbf16> to vector<16x8xbf16>
    %18 = vector.extract_strided_slice %16 {offsets = [0, 56], sizes = [16, 8], strides = [1, 1]} : vector<32x112xbf16> to vector<16x8xbf16>
    %19 = vector.extract_strided_slice %8 {offsets = [0, 0], sizes = [8, 16], strides = [1, 1]} : vector<56x32xbf16> to vector<8x16xbf16>
    %cst_12 = arith.constant dense<0.000000e+00> : vector<16x16xf32>
    %20 = tpu.matmul %17, %19, %cst_12 {dimension_numbers = #tpu.dot_dimension_numbers<[1], [0], [0], [1], [0, 0, 1, 1], [], []>} : vector<16x8xbf16>, vector<8x16xbf16>, vector<16x16xf32> -> vector<16x16xf32>
    %cst_13 = arith.constant dense<0xFF800000> : vector<16xf32>
    %21 = vector.multi_reduction <maximumf>, %20, %cst_13 [1] : vector<16x16xf32> to vector<16xf32>
    %22 = vector.shape_cast %21 : vector<16xf32> to vector<16x1xf32>
    %23 = vector.broadcast %22 : vector<16x1xf32> to vector<16x16xf32>
    %24 = arith.subf %20, %23 : vector<16x16xf32>
    %25 = math.exp %24 : vector<16x16xf32>
    %cst_14 = arith.constant dense<0.000000e+00> : vector<16xf32>
    %26 = vector.multi_reduction <add>, %25, %cst_14 [1] : vector<16x16xf32> to vector<16xf32>
    %27 = vector.shape_cast %26 : vector<16xf32> to vector<16x1xf32>
    %28 = tpu.reciprocal %27 {approx = true} : vector<16x1xf32> -> vector<16x1xf32>
    %29 = vector.broadcast %28 : vector<16x1xf32> to vector<16x16xf32>
    %30 = arith.mulf %25, %29 : vector<16x16xf32>
    %31 = arith.truncf %30 : vector<16x16xf32> to vector<16x16xbf16>
    %cst_15 = arith.constant dense<0.000000e+00> : vector<16x8xf32>
    %32 = tpu.matmul %31, %18, %cst_15 {dimension_numbers = #tpu.dot_dimension_numbers<[1], [0], [0], [1], [0, 0, 1, 1], [], []>} : vector<16x16xbf16>, vector<16x8xbf16>, vector<16x8xf32> -> vector<16x8xf32>
    %c0_16 = arith.constant 0 : index
    %c0_17 = arith.constant 0 : index
    %33 = vector.load %arg9[%c0_16, %c0_17] : memref<32x56xf32, #tpu.memory_space<vmem>>, vector<16x8xf32>
    tpu.vector_store %arg9[%c0_16, %c0_17], %32 {strides = array<i32>} : memref<32x56xf32, #tpu.memory_space<vmem>>, vector<16x8xf32>,
    %34 = vector.extract_strided_slice %16 {offsets = [0, 8], sizes = [16, 8], strides = [1, 1]} : vector<32x112xbf16> to vector<16x8xbf16>
    %35 = vector.extract_strided_slice %16 {offsets = [0, 64], sizes = [16, 8], strides = [1, 1]} : vector<32x112xbf16> to vector<16x8xbf16>
    %36 = vector.extract_strided_slice %8 {offsets = [8, 0], sizes = [8, 16], strides = [1, 1]} : vector<56x32xbf16> to vector<8x16xbf16>
    %cst_18 = arith.constant dense<0.000000e+00> : vector<16x16xf32>
    %37 = tpu.matmul %34, %36, %cst_18 {dimension_numbers = #tpu.dot_dimension_numbers<[1], [0], [0], [1], [0, 0, 1, 1], [], []>} : vector<16x8xbf16>, vector<8x16xbf16>, vector<16x16xf32> -> vector<16x16xf32>
    %cst_19 = arith.constant dense<0xFF800000> : vector<16xf32>
    %38 = vector.multi_reduction <maximumf>, %37, %cst_19 [1] : vector<16x16xf32> to vector<16xf32>
    %39 = vector.shape_cast %38 : vector<16xf32> to vector<16x1xf32>
    %40 = vector.broadcast %39 : vector<16x1xf32> to vector<16x16xf32>
    %41 = arith.subf %37, %40 : vector<16x16xf32>
    %42 = math.exp %41 : vector<16x16xf32>
    %cst_20 = arith.constant dense<0.000000e+00> : vector<16xf32>
    %43 = vector.multi_reduction <add>, %42, %cst_20 [1] : vector<16x16xf32> to vector<16xf32>
    %44 = vector.shape_cast %43 : vector<16xf32> to vector<16x1xf32>
    %45 = tpu.reciprocal %44 {approx = true} : vector<16x1xf32> -> vector<16x1xf32>
    %46 = vector.broadcast %45 : vector<16x1xf32> to vector<16x16xf32>
    %47 = arith.mulf %42, %46 : vector<16x16xf32>
    %48 = arith.truncf %47 : vector<16x16xf32> to vector<16x16xbf16>
    %cst_21 = arith.constant dense<0.000000e+00> : vector<16x8xf32>
    %49 = tpu.matmul %48, %35, %cst_21 {dimension_numbers = #tpu.dot_dimension_numbers<[1], [0], [0], [1], [0, 0, 1, 1], [], []>} : vector<16x16xbf16>, vector<16x8xbf16>, vector<16x8xf32> -> vector<16x8xf32>
    %c0_22 = arith.constant 0 : index
    %c8 = arith.constant 8 : index
    %50 = vector.load %arg9[%c0_22, %c8] : memref<32x56xf32, #tpu.memory_space<vmem>>, vector<16x8xf32>
    tpu.vector_store %arg9[%c0_22, %c8], %49 {strides = array<i32>} : memref<32x56xf32, #tpu.memory_space<vmem>>, vector<16x8xf32>,
    %51 = vector.extract_strided_slice %16 {offsets = [0, 16], sizes = [16, 8], strides = [1, 1]} : vector<32x112xbf16> to vector<16x8xbf16>
    %52 = vector.extract_strided_slice %16 {offsets = [0, 72], sizes = [16, 8], strides = [1, 1]} : vector<32x112xbf16> to vector<16x8xbf16>
    %53 = vector.extract_strided_slice %8 {offsets = [16, 0], sizes = [8, 16], strides = [1, 1]} : vector<56x32xbf16> to vector<8x16xbf16>
    %cst_23 = arith.constant dense<0.000000e+00> : vector<16x16xf32>
    %54 = tpu.matmul %51, %53, %cst_23 {dimension_numbers = #tpu.dot_dimension_numbers<[1], [0], [0], [1], [0, 0, 1, 1], [], []>} : vector<16x8xbf16>, vector<8x16xbf16>, vector<16x16xf32> -> vector<16x16xf32>
    %cst_24 = arith.constant dense<0xFF800000> : vector<16xf32>
    %55 = vector.multi_reduction <maximumf>, %54, %cst_24 [1] : vector<16x16xf32> to vector<16xf32>
    %56 = vector.shape_cast %55 : vector<16xf32> to vector<16x1xf32>
    %57 = vector.broadcast %56 : vector<16x1xf32> to vector<16x16xf32>
    %58 = arith.subf %54, %57 : vector<16x16xf32>
    %59 = math.exp %58 : vector<16x16xf32>
    %cst_25 = arith.constant dense<0.000000e+00> : vector<16xf32>
    %60 = vector.multi_reduction <add>, %59, %cst_25 [1] : vector<16x16xf32> to vector<16xf32>
    %61 = vector.shape_cast %60 : vector<16xf32> to vector<16x1xf32>
    %62 = tpu.reciprocal %61 {approx = true} : vector<16x1xf32> -> vector<16x1xf32>
    %63 = vector.broadcast %62 : vector<16x1xf32> to vector<16x16xf32>
    %64 = arith.mulf %59, %63 : vector<16x16xf32>
    %65 = arith.truncf %64 : vector<16x16xf32> to vector<16x16xbf16>
    %cst_26 = arith.constant dense<0.000000e+00> : vector<16x8xf32>
    %66 = tpu.matmul %65, %52, %cst_26 {dimension_numbers = #tpu.dot_dimension_numbers<[1], [0], [0], [1], [0, 0, 1, 1], [], []>} : vector<16x16xbf16>, vector<16x8xbf16>, vector<16x8xf32> -> vector<16x8xf32>
    %c0_27 = arith.constant 0 : index
    %c16 = arith.constant 16 : index
    %67 = vector.load %arg9[%c0_27, %c16] : memref<32x56xf32, #tpu.memory_space<vmem>>, vector<16x8xf32>
    tpu.vector_store %arg9[%c0_27, %c16], %66 {strides = array<i32>} : memref<32x56xf32, #tpu.memory_space<vmem>>, vector<16x8xf32>,
    %68 = vector.extract_strided_slice %16 {offsets = [0, 24], sizes = [16, 8], strides = [1, 1]} : vector<32x112xbf16> to vector<16x8xbf16>
    %69 = vector.extract_strided_slice %16 {offsets = [0, 80], sizes = [16, 8], strides = [1, 1]} : vector<32x112xbf16> to vector<16x8xbf16>
    %70 = vector.extract_strided_slice %8 {offsets = [24, 0], sizes = [8, 16], strides = [1, 1]} : vector<56x32xbf16> to vector<8x16xbf16>
    %cst_28 = arith.constant dense<0.000000e+00> : vector<16x16xf32>
    %71 = tpu.matmul %68, %70, %cst_28 {dimension_numbers = #tpu.dot_dimension_numbers<[1], [0], [0], [1], [0, 0, 1, 1], [], []>} : vector<16x8xbf16>, vector<8x16xbf16>, vector<16x16xf32> -> vector<16x16xf32>
    %cst_29 = arith.constant dense<0xFF800000> : vector<16xf32>
    %72 = vector.multi_reduction <maximumf>, %71, %cst_29 [1] : vector<16x16xf32> to vector<16xf32>
    %73 = vector.shape_cast %72 : vector<16xf32> to vector<16x1xf32>
    %74 = vector.broadcast %73 : vector<16x1xf32> to vector<16x16xf32>
    %75 = arith.subf %71, %74 : vector<16x16xf32>
    %76 = math.exp %75 : vector<16x16xf32>
    %cst_30 = arith.constant dense<0.000000e+00> : vector<16xf32>
    %77 = vector.multi_reduction <add>, %76, %cst_30 [1] : vector<16x16xf32> to vector<16xf32>
    %78 = vector.shape_cast %77 : vector<16xf32> to vector<16x1xf32>
    %79 = tpu.reciprocal %78 {approx = true} : vector<16x1xf32> -> vector<16x1xf32>
    %80 = vector.broadcast %79 : vector<16x1xf32> to vector<16x16xf32>
    %81 = arith.mulf %76, %80 : vector<16x16xf32>
    %82 = arith.truncf %81 : vector<16x16xf32> to vector<16x16xbf16>
    %cst_31 = arith.constant dense<0.000000e+00> : vector<16x8xf32>
    %83 = tpu.matmul %82, %69, %cst_31 {dimension_numbers = #tpu.dot_dimension_numbers<[1], [0], [0], [1], [0, 0, 1, 1], [], []>} : vector<16x16xbf16>, vector<16x8xbf16>, vector<16x8xf32> -> vector<16x8xf32>
    %c0_32 = arith.constant 0 : index
    %c24 = arith.constant 24 : index
    %84 = vector.load %arg9[%c0_32, %c24] : memref<32x56xf32, #tpu.memory_space<vmem>>, vector<16x8xf32>
    tpu.vector_store %arg9[%c0_32, %c24], %83 {strides = array<i32>} : memref<32x56xf32, #tpu.memory_space<vmem>>, vector<16x8xf32>,
    %85 = vector.extract_strided_slice %16 {offsets = [0, 32], sizes = [16, 8], strides = [1, 1]} : vector<32x112xbf16> to vector<16x8xbf16>
    %86 = vector.extract_strided_slice %16 {offsets = [0, 88], sizes = [16, 8], strides = [1, 1]} : vector<32x112xbf16> to vector<16x8xbf16>
    %87 = vector.extract_strided_slice %8 {offsets = [32, 0], sizes = [8, 16], strides = [1, 1]} : vector<56x32xbf16> to vector<8x16xbf16>
    %cst_33 = arith.constant dense<0.000000e+00> : vector<16x16xf32>
    %88 = tpu.matmul %85, %87, %cst_33 {dimension_numbers = #tpu.dot_dimension_numbers<[1], [0], [0], [1], [0, 0, 1, 1], [], []>} : vector<16x8xbf16>, vector<8x16xbf16>, vector<16x16xf32> -> vector<16x16xf32>
    %cst_34 = arith.constant dense<0xFF800000> : vector<16xf32>
    %89 = vector.multi_reduction <maximumf>, %88, %cst_34 [1] : vector<16x16xf32> to vector<16xf32>
    %90 = vector.shape_cast %89 : vector<16xf32> to vector<16x1xf32>
    %91 = vector.broadcast %90 : vector<16x1xf32> to vector<16x16xf32>
    %92 = arith.subf %88, %91 : vector<16x16xf32>
    %93 = math.exp %92 : vector<16x16xf32>
    %cst_35 = arith.constant dense<0.000000e+00> : vector<16xf32>
    %94 = vector.multi_reduction <add>, %93, %cst_35 [1] : vector<16x16xf32> to vector<16xf32>
    %95 = vector.shape_cast %94 : vector<16xf32> to vector<16x1xf32>
    %96 = tpu.reciprocal %95 {approx = true} : vector<16x1xf32> -> vector<16x1xf32>
    %97 = vector.broadcast %96 : vector<16x1xf32> to vector<16x16xf32>
    %98 = arith.mulf %93, %97 : vector<16x16xf32>
    %99 = arith.truncf %98 : vector<16x16xf32> to vector<16x16xbf16>
    %cst_36 = arith.constant dense<0.000000e+00> : vector<16x8xf32>
    %100 = tpu.matmul %99, %86, %cst_36 {dimension_numbers = #tpu.dot_dimension_numbers<[1], [0], [0], [1], [0, 0, 1, 1], [], []>} : vector<16x16xbf16>, vector<16x8xbf16>, vector<16x8xf32> -> vector<16x8xf32>
    %c0_37 = arith.constant 0 : index
    %c32 = arith.constant 32 : index
    %101 = vector.load %arg9[%c0_37, %c32] : memref<32x56xf32, #tpu.memory_space<vmem>>, vector<16x8xf32>
    tpu.vector_store %arg9[%c0_37, %c32], %100 {strides = array<i32>} : memref<32x56xf32, #tpu.memory_space<vmem>>, vector<16x8xf32>,
    %102 = vector.extract_strided_slice %16 {offsets = [0, 40], sizes = [16, 8], strides = [1, 1]} : vector<32x112xbf16> to vector<16x8xbf16>
    %103 = vector.extract_strided_slice %16 {offsets = [0, 96], sizes = [16, 8], strides = [1, 1]} : vector<32x112xbf16> to vector<16x8xbf16>
    %104 = vector.extract_strided_slice %8 {offsets = [40, 0], sizes = [8, 16], strides = [1, 1]} : vector<56x32xbf16> to vector<8x16xbf16>
    %cst_38 = arith.constant dense<0.000000e+00> : vector<16x16xf32>
    %105 = tpu.matmul %102, %104, %cst_38 {dimension_numbers = #tpu.dot_dimension_numbers<[1], [0], [0], [1], [0, 0, 1, 1], [], []>} : vector<16x8xbf16>, vector<8x16xbf16>, vector<16x16xf32> -> vector<16x16xf32>
    %cst_39 = arith.constant dense<0xFF800000> : vector<16xf32>
    %106 = vector.multi_reduction <maximumf>, %105, %cst_39 [1] : vector<16x16xf32> to vector<16xf32>
    %107 = vector.shape_cast %106 : vector<16xf32> to vector<16x1xf32>
    %108 = vector.broadcast %107 : vector<16x1xf32> to vector<16x16xf32>
    %109 = arith.subf %105, %108 : vector<16x16xf32>
    %110 = math.exp %109 : vector<16x16xf32>
    %cst_40 = arith.constant dense<0.000000e+00> : vector<16xf32>
    %111 = vector.multi_reduction <add>, %110, %cst_40 [1] : vector<16x16xf32> to vector<16xf32>
    %112 = vector.shape_cast %111 : vector<16xf32> to vector<16x1xf32>
    %113 = tpu.reciprocal %112 {approx = true} : vector<16x1xf32> -> vector<16x1xf32>
    %114 = vector.broadcast %113 : vector<16x1xf32> to vector<16x16xf32>
    %115 = arith.mulf %110, %114 : vector<16x16xf32>
    %116 = arith.truncf %115 : vector<16x16xf32> to vector<16x16xbf16>
    %cst_41 = arith.constant dense<0.000000e+00> : vector<16x8xf32>
    %117 = tpu.matmul %116, %103, %cst_41 {dimension_numbers = #tpu.dot_dimension_numbers<[1], [0], [0], [1], [0, 0, 1, 1], [], []>} : vector<16x16xbf16>, vector<16x8xbf16>, vector<16x8xf32> -> vector<16x8xf32>
    %c0_42 = arith.constant 0 : index
    %c40 = arith.constant 40 : index
    %118 = vector.load %arg9[%c0_42, %c40] : memref<32x56xf32, #tpu.memory_space<vmem>>, vector<16x8xf32>
    tpu.vector_store %arg9[%c0_42, %c40], %117 {strides = array<i32>} : memref<32x56xf32, #tpu.memory_space<vmem>>, vector<16x8xf32>,
    %119 = vector.extract_strided_slice %16 {offsets = [0, 48], sizes = [16, 8], strides = [1, 1]} : vector<32x112xbf16> to vector<16x8xbf16>
    %120 = vector.extract_strided_slice %16 {offsets = [0, 104], sizes = [16, 8], strides = [1, 1]} : vector<32x112xbf16> to vector<16x8xbf16>
    %121 = vector.extract_strided_slice %8 {offsets = [48, 0], sizes = [8, 16], strides = [1, 1]} : vector<56x32xbf16> to vector<8x16xbf16>
    %cst_43 = arith.constant dense<0.000000e+00> : vector<16x16xf32>
    %122 = tpu.matmul %119, %121, %cst_43 {dimension_numbers = #tpu.dot_dimension_numbers<[1], [0], [0], [1], [0, 0, 1, 1], [], []>} : vector<16x8xbf16>, vector<8x16xbf16>, vector<16x16xf32> -> vector<16x16xf32>
    %cst_44 = arith.constant dense<0xFF800000> : vector<16xf32>
    %123 = vector.multi_reduction <maximumf>, %122, %cst_44 [1] : vector<16x16xf32> to vector<16xf32>
    %124 = vector.shape_cast %123 : vector<16xf32> to vector<16x1xf32>
    %125 = vector.broadcast %124 : vector<16x1xf32> to vector<16x16xf32>
    %126 = arith.subf %122, %125 : vector<16x16xf32>
    %127 = math.exp %126 : vector<16x16xf32>
    %cst_45 = arith.constant dense<0.000000e+00> : vector<16xf32>
    %128 = vector.multi_reduction <add>, %127, %cst_45 [1] : vector<16x16xf32> to vector<16xf32>
    %129 = vector.shape_cast %128 : vector<16xf32> to vector<16x1xf32>
    %130 = tpu.reciprocal %129 {approx = true} : vector<16x1xf32> -> vector<16x1xf32>
    %131 = vector.broadcast %130 : vector<16x1xf32> to vector<16x16xf32>
    %132 = arith.mulf %127, %131 : vector<16x16xf32>
    %133 = arith.truncf %132 : vector<16x16xf32> to vector<16x16xbf16>
    %cst_46 = arith.constant dense<0.000000e+00> : vector<16x8xf32>
    %134 = tpu.matmul %133, %120, %cst_46 {dimension_numbers = #tpu.dot_dimension_numbers<[1], [0], [0], [1], [0, 0, 1, 1], [], []>} : vector<16x16xbf16>, vector<16x8xbf16>, vector<16x8xf32> -> vector<16x8xf32>
    %c0_47 = arith.constant 0 : index
    %c48 = arith.constant 48 : index
    %135 = vector.load %arg9[%c0_47, %c48] : memref<32x56xf32, #tpu.memory_space<vmem>>, vector<16x8xf32>
    tpu.vector_store %arg9[%c0_47, %c48], %134 {strides = array<i32>} : memref<32x56xf32, #tpu.memory_space<vmem>>, vector<16x8xf32>,
    %136 = vector.extract_strided_slice %16 {offsets = [16, 0], sizes = [16, 8], strides = [1, 1]} : vector<32x112xbf16> to vector<16x8xbf16>
    %137 = vector.extract_strided_slice %16 {offsets = [16, 56], sizes = [16, 8], strides = [1, 1]} : vector<32x112xbf16> to vector<16x8xbf16>
    %138 = vector.extract_strided_slice %8 {offsets = [0, 16], sizes = [8, 16], strides = [1, 1]} : vector<56x32xbf16> to vector<8x16xbf16>
    %cst_48 = arith.constant dense<0.000000e+00> : vector<16x16xf32>
    %139 = tpu.matmul %136, %138, %cst_48 {dimension_numbers = #tpu.dot_dimension_numbers<[1], [0], [0], [1], [0, 0, 1, 1], [], []>} : vector<16x8xbf16>, vector<8x16xbf16>, vector<16x16xf32> -> vector<16x16xf32>
    %cst_49 = arith.constant dense<0xFF800000> : vector<16xf32>
    %140 = vector.multi_reduction <maximumf>, %139, %cst_49 [1] : vector<16x16xf32> to vector<16xf32>
    %141 = vector.shape_cast %140 : vector<16xf32> to vector<16x1xf32>
    %142 = vector.broadcast %141 : vector<16x1xf32> to vector<16x16xf32>
    %143 = arith.subf %139, %142 : vector<16x16xf32>
    %144 = math.exp %143 : vector<16x16xf32>
    %cst_50 = arith.constant dense<0.000000e+00> : vector<16xf32>
    %145 = vector.multi_reduction <add>, %144, %cst_50 [1] : vector<16x16xf32> to vector<16xf32>
    %146 = vector.shape_cast %145 : vector<16xf32> to vector<16x1xf32>
    %147 = tpu.reciprocal %146 {approx = true} : vector<16x1xf32> -> vector<16x1xf32>
    %148 = vector.broadcast %147 : vector<16x1xf32> to vector<16x16xf32>
    %149 = arith.mulf %144, %148 : vector<16x16xf32>
    %150 = arith.truncf %149 : vector<16x16xf32> to vector<16x16xbf16>
    %cst_51 = arith.constant dense<0.000000e+00> : vector<16x8xf32>
    %151 = tpu.matmul %150, %137, %cst_51 {dimension_numbers = #tpu.dot_dimension_numbers<[1], [0], [0], [1], [0, 0, 1, 1], [], []>} : vector<16x16xbf16>, vector<16x8xbf16>, vector<16x8xf32> -> vector<16x8xf32>
    %c16_52 = arith.constant 16 : index
    %c0_53 = arith.constant 0 : index
    %152 = vector.load %arg9[%c16_52, %c0_53] : memref<32x56xf32, #tpu.memory_space<vmem>>, vector<16x8xf32>
    tpu.vector_store %arg9[%c16_52, %c0_53], %151 {strides = array<i32>} : memref<32x56xf32, #tpu.memory_space<vmem>>, vector<16x8xf32>,
    %153 = vector.extract_strided_slice %16 {offsets = [16, 8], sizes = [16, 8], strides = [1, 1]} : vector<32x112xbf16> to vector<16x8xbf16>
    %154 = vector.extract_strided_slice %16 {offsets = [16, 64], sizes = [16, 8], strides = [1, 1]} : vector<32x112xbf16> to vector<16x8xbf16>
    %155 = vector.extract_strided_slice %8 {offsets = [8, 16], sizes = [8, 16], strides = [1, 1]} : vector<56x32xbf16> to vector<8x16xbf16>
    %cst_54 = arith.constant dense<0.000000e+00> : vector<16x16xf32>
    %156 = tpu.matmul %153, %155, %cst_54 {dimension_numbers = #tpu.dot_dimension_numbers<[1], [0], [0], [1], [0, 0, 1, 1], [], []>} : vector<16x8xbf16>, vector<8x16xbf16>, vector<16x16xf32> -> vector<16x16xf32>
    %cst_55 = arith.constant dense<0xFF800000> : vector<16xf32>
    %157 = vector.multi_reduction <maximumf>, %156, %cst_55 [1] : vector<16x16xf32> to vector<16xf32>
    %158 = vector.shape_cast %157 : vector<16xf32> to vector<16x1xf32>
    %159 = vector.broadcast %158 : vector<16x1xf32> to vector<16x16xf32>
    %160 = arith.subf %156, %159 : vector<16x16xf32>
    %161 = math.exp %160 : vector<16x16xf32>
    %cst_56 = arith.constant dense<0.000000e+00> : vector<16xf32>
    %162 = vector.multi_reduction <add>, %161, %cst_56 [1] : vector<16x16xf32> to vector<16xf32>
    %163 = vector.shape_cast %162 : vector<16xf32> to vector<16x1xf32>
    %164 = tpu.reciprocal %163 {approx = true} : vector<16x1xf32> -> vector<16x1xf32>
    %165 = vector.broadcast %164 : vector<16x1xf32> to vector<16x16xf32>
    %166 = arith.mulf %161, %165 : vector<16x16xf32>
    %167 = arith.truncf %166 : vector<16x16xf32> to vector<16x16xbf16>
    %cst_57 = arith.constant dense<0.000000e+00> : vector<16x8xf32>
    %168 = tpu.matmul %167, %154, %cst_57 {dimension_numbers = #tpu.dot_dimension_numbers<[1], [0], [0], [1], [0, 0, 1, 1], [], []>} : vector<16x16xbf16>, vector<16x8xbf16>, vector<16x8xf32> -> vector<16x8xf32>
    %c16_58 = arith.constant 16 : index
    %c8_59 = arith.constant 8 : index
    %169 = vector.load %arg9[%c16_58, %c8_59] : memref<32x56xf32, #tpu.memory_space<vmem>>, vector<16x8xf32>
    tpu.vector_store %arg9[%c16_58, %c8_59], %168 {strides = array<i32>} : memref<32x56xf32, #tpu.memory_space<vmem>>, vector<16x8xf32>,
    %170 = vector.extract_strided_slice %16 {offsets = [16, 16], sizes = [16, 8], strides = [1, 1]} : vector<32x112xbf16> to vector<16x8xbf16>
    %171 = vector.extract_strided_slice %16 {offsets = [16, 72], sizes = [16, 8], strides = [1, 1]} : vector<32x112xbf16> to vector<16x8xbf16>
    %172 = vector.extract_strided_slice %8 {offsets = [16, 16], sizes = [8, 16], strides = [1, 1]} : vector<56x32xbf16> to vector<8x16xbf16>
    %cst_60 = arith.constant dense<0.000000e+00> : vector<16x16xf32>
    %173 = tpu.matmul %170, %172, %cst_60 {dimension_numbers = #tpu.dot_dimension_numbers<[1], [0], [0], [1], [0, 0, 1, 1], [], []>} : vector<16x8xbf16>, vector<8x16xbf16>, vector<16x16xf32> -> vector<16x16xf32>
    %cst_61 = arith.constant dense<0xFF800000> : vector<16xf32>
    %174 = vector.multi_reduction <maximumf>, %173, %cst_61 [1] : vector<16x16xf32> to vector<16xf32>
    %175 = vector.shape_cast %174 : vector<16xf32> to vector<16x1xf32>
    %176 = vector.broadcast %175 : vector<16x1xf32> to vector<16x16xf32>
    %177 = arith.subf %173, %176 : vector<16x16xf32>
    %178 = math.exp %177 : vector<16x16xf32>
    %cst_62 = arith.constant dense<0.000000e+00> : vector<16xf32>
    %179 = vector.multi_reduction <add>, %178, %cst_62 [1] : vector<16x16xf32> to vector<16xf32>
    %180 = vector.shape_cast %179 : vector<16xf32> to vector<16x1xf32>
    %181 = tpu.reciprocal %180 {approx = true} : vector<16x1xf32> -> vector<16x1xf32>
    %182 = vector.broadcast %181 : vector<16x1xf32> to vector<16x16xf32>
    %183 = arith.mulf %178, %182 : vector<16x16xf32>
    %184 = arith.truncf %183 : vector<16x16xf32> to vector<16x16xbf16>
    %cst_63 = arith.constant dense<0.000000e+00> : vector<16x8xf32>
    %185 = tpu.matmul %184, %171, %cst_63 {dimension_numbers = #tpu.dot_dimension_numbers<[1], [0], [0], [1], [0, 0, 1, 1], [], []>} : vector<16x16xbf16>, vector<16x8xbf16>, vector<16x8xf32> -> vector<16x8xf32>
    %c16_64 = arith.constant 16 : index
    %c16_65 = arith.constant 16 : index
    %186 = vector.load %arg9[%c16_64, %c16_65] : memref<32x56xf32, #tpu.memory_space<vmem>>, vector<16x8xf32>
    tpu.vector_store %arg9[%c16_64, %c16_65], %185 {strides = array<i32>} : memref<32x56xf32, #tpu.memory_space<vmem>>, vector<16x8xf32>,
    %187 = vector.extract_strided_slice %16 {offsets = [16, 24], sizes = [16, 8], strides = [1, 1]} : vector<32x112xbf16> to vector<16x8xbf16>
    %188 = vector.extract_strided_slice %16 {offsets = [16, 80], sizes = [16, 8], strides = [1, 1]} : vector<32x112xbf16> to vector<16x8xbf16>
    %189 = vector.extract_strided_slice %8 {offsets = [24, 16], sizes = [8, 16], strides = [1, 1]} : vector<56x32xbf16> to vector<8x16xbf16>
    %cst_66 = arith.constant dense<0.000000e+00> : vector<16x16xf32>
    %190 = tpu.matmul %187, %189, %cst_66 {dimension_numbers = #tpu.dot_dimension_numbers<[1], [0], [0], [1], [0, 0, 1, 1], [], []>} : vector<16x8xbf16>, vector<8x16xbf16>, vector<16x16xf32> -> vector<16x16xf32>
    %cst_67 = arith.constant dense<0xFF800000> : vector<16xf32>
    %191 = vector.multi_reduction <maximumf>, %190, %cst_67 [1] : vector<16x16xf32> to vector<16xf32>
    %192 = vector.shape_cast %191 : vector<16xf32> to vector<16x1xf32>
    %193 = vector.broadcast %192 : vector<16x1xf32> to vector<16x16xf32>
    %194 = arith.subf %190, %193 : vector<16x16xf32>
    %195 = math.exp %194 : vector<16x16xf32>
    %cst_68 = arith.constant dense<0.000000e+00> : vector<16xf32>
    %196 = vector.multi_reduction <add>, %195, %cst_68 [1] : vector<16x16xf32> to vector<16xf32>
    %197 = vector.shape_cast %196 : vector<16xf32> to vector<16x1xf32>
    %198 = tpu.reciprocal %197 {approx = true} : vector<16x1xf32> -> vector<16x1xf32>
    %199 = vector.broadcast %198 : vector<16x1xf32> to vector<16x16xf32>
    %200 = arith.mulf %195, %199 : vector<16x16xf32>
    %201 = arith.truncf %200 : vector<16x16xf32> to vector<16x16xbf16>
    %cst_69 = arith.constant dense<0.000000e+00> : vector<16x8xf32>
    %202 = tpu.matmul %201, %188, %cst_69 {dimension_numbers = #tpu.dot_dimension_numbers<[1], [0], [0], [1], [0, 0, 1, 1], [], []>} : vector<16x16xbf16>, vector<16x8xbf16>, vector<16x8xf32> -> vector<16x8xf32>
    %c16_70 = arith.constant 16 : index
    %c24_71 = arith.constant 24 : index
    %203 = vector.load %arg9[%c16_70, %c24_71] : memref<32x56xf32, #tpu.memory_space<vmem>>, vector<16x8xf32>
    tpu.vector_store %arg9[%c16_70, %c24_71], %202 {strides = array<i32>} : memref<32x56xf32, #tpu.memory_space<vmem>>, vector<16x8xf32>,
    %204 = vector.extract_strided_slice %16 {offsets = [16, 32], sizes = [16, 8], strides = [1, 1]} : vector<32x112xbf16> to vector<16x8xbf16>
    %205 = vector.extract_strided_slice %16 {offsets = [16, 88], sizes = [16, 8], strides = [1, 1]} : vector<32x112xbf16> to vector<16x8xbf16>
    %206 = vector.extract_strided_slice %8 {offsets = [32, 16], sizes = [8, 16], strides = [1, 1]} : vector<56x32xbf16> to vector<8x16xbf16>
    %cst_72 = arith.constant dense<0.000000e+00> : vector<16x16xf32>
    %207 = tpu.matmul %204, %206, %cst_72 {dimension_numbers = #tpu.dot_dimension_numbers<[1], [0], [0], [1], [0, 0, 1, 1], [], []>} : vector<16x8xbf16>, vector<8x16xbf16>, vector<16x16xf32> -> vector<16x16xf32>
    %cst_73 = arith.constant dense<0xFF800000> : vector<16xf32>
    %208 = vector.multi_reduction <maximumf>, %207, %cst_73 [1] : vector<16x16xf32> to vector<16xf32>
    %209 = vector.shape_cast %208 : vector<16xf32> to vector<16x1xf32>
    %210 = vector.broadcast %209 : vector<16x1xf32> to vector<16x16xf32>
    %211 = arith.subf %207, %210 : vector<16x16xf32>
    %212 = math.exp %211 : vector<16x16xf32>
    %cst_74 = arith.constant dense<0.000000e+00> : vector<16xf32>
    %213 = vector.multi_reduction <add>, %212, %cst_74 [1] : vector<16x16xf32> to vector<16xf32>
    %214 = vector.shape_cast %213 : vector<16xf32> to vector<16x1xf32>
    %215 = tpu.reciprocal %214 {approx = true} : vector<16x1xf32> -> vector<16x1xf32>
    %216 = vector.broadcast %215 : vector<16x1xf32> to vector<16x16xf32>
    %217 = arith.mulf %212, %216 : vector<16x16xf32>
    %218 = arith.truncf %217 : vector<16x16xf32> to vector<16x16xbf16>
    %cst_75 = arith.constant dense<0.000000e+00> : vector<16x8xf32>
    %219 = tpu.matmul %218, %205, %cst_75 {dimension_numbers = #tpu.dot_dimension_numbers<[1], [0], [0], [1], [0, 0, 1, 1], [], []>} : vector<16x16xbf16>, vector<16x8xbf16>, vector<16x8xf32> -> vector<16x8xf32>
    %c16_76 = arith.constant 16 : index
    %c32_77 = arith.constant 32 : index
    %220 = vector.load %arg9[%c16_76, %c32_77] : memref<32x56xf32, #tpu.memory_space<vmem>>, vector<16x8xf32>
    tpu.vector_store %arg9[%c16_76, %c32_77], %219 {strides = array<i32>} : memref<32x56xf32, #tpu.memory_space<vmem>>, vector<16x8xf32>,
    %221 = vector.extract_strided_slice %16 {offsets = [16, 40], sizes = [16, 8], strides = [1, 1]} : vector<32x112xbf16> to vector<16x8xbf16>
    %222 = vector.extract_strided_slice %16 {offsets = [16, 96], sizes = [16, 8], strides = [1, 1]} : vector<32x112xbf16> to vector<16x8xbf16>
    %223 = vector.extract_strided_slice %8 {offsets = [40, 16], sizes = [8, 16], strides = [1, 1]} : vector<56x32xbf16> to vector<8x16xbf16>
    %cst_78 = arith.constant dense<0.000000e+00> : vector<16x16xf32>
    %224 = tpu.matmul %221, %223, %cst_78 {dimension_numbers = #tpu.dot_dimension_numbers<[1], [0], [0], [1], [0, 0, 1, 1], [], []>} : vector<16x8xbf16>, vector<8x16xbf16>, vector<16x16xf32> -> vector<16x16xf32>
    %cst_79 = arith.constant dense<0xFF800000> : vector<16xf32>
    %225 = vector.multi_reduction <maximumf>, %224, %cst_79 [1] : vector<16x16xf32> to vector<16xf32>
    %226 = vector.shape_cast %225 : vector<16xf32> to vector<16x1xf32>
    %227 = vector.broadcast %226 : vector<16x1xf32> to vector<16x16xf32>
    %228 = arith.subf %224, %227 : vector<16x16xf32>
    %229 = math.exp %228 : vector<16x16xf32>
    %cst_80 = arith.constant dense<0.000000e+00> : vector<16xf32>
    %230 = vector.multi_reduction <add>, %229, %cst_80 [1] : vector<16x16xf32> to vector<16xf32>
    %231 = vector.shape_cast %230 : vector<16xf32> to vector<16x1xf32>
    %232 = tpu.reciprocal %231 {approx = true} : vector<16x1xf32> -> vector<16x1xf32>
    %233 = vector.broadcast %232 : vector<16x1xf32> to vector<16x16xf32>
    %234 = arith.mulf %229, %233 : vector<16x16xf32>
    %235 = arith.truncf %234 : vector<16x16xf32> to vector<16x16xbf16>
    %cst_81 = arith.constant dense<0.000000e+00> : vector<16x8xf32>
    %236 = tpu.matmul %235, %222, %cst_81 {dimension_numbers = #tpu.dot_dimension_numbers<[1], [0], [0], [1], [0, 0, 1, 1], [], []>} : vector<16x16xbf16>, vector<16x8xbf16>, vector<16x8xf32> -> vector<16x8xf32>
    %c16_82 = arith.constant 16 : index
    %c40_83 = arith.constant 40 : index
    %237 = vector.load %arg9[%c16_82, %c40_83] : memref<32x56xf32, #tpu.memory_space<vmem>>, vector<16x8xf32>
    tpu.vector_store %arg9[%c16_82, %c40_83], %236 {strides = array<i32>} : memref<32x56xf32, #tpu.memory_space<vmem>>, vector<16x8xf32>,
    %238 = vector.extract_strided_slice %16 {offsets = [16, 48], sizes = [16, 8], strides = [1, 1]} : vector<32x112xbf16> to vector<16x8xbf16>
    %239 = vector.extract_strided_slice %16 {offsets = [16, 104], sizes = [16, 8], strides = [1, 1]} : vector<32x112xbf16> to vector<16x8xbf16>
    %240 = vector.extract_strided_slice %8 {offsets = [48, 16], sizes = [8, 16], strides = [1, 1]} : vector<56x32xbf16> to vector<8x16xbf16>
    %cst_84 = arith.constant dense<0.000000e+00> : vector<16x16xf32>
    %241 = tpu.matmul %238, %240, %cst_84 {dimension_numbers = #tpu.dot_dimension_numbers<[1], [0], [0], [1], [0, 0, 1, 1], [], []>} : vector<16x8xbf16>, vector<8x16xbf16>, vector<16x16xf32> -> vector<16x16xf32>
    %cst_85 = arith.constant dense<0xFF800000> : vector<16xf32>
    %242 = vector.multi_reduction <maximumf>, %241, %cst_85 [1] : vector<16x16xf32> to vector<16xf32>
    %243 = vector.shape_cast %242 : vector<16xf32> to vector<16x1xf32>
    %244 = vector.broadcast %243 : vector<16x1xf32> to vector<16x16xf32>
    %245 = arith.subf %241, %244 : vector<16x16xf32>
    %246 = math.exp %245 : vector<16x16xf32>
    %cst_86 = arith.constant dense<0.000000e+00> : vector<16xf32>
    %247 = vector.multi_reduction <add>, %246, %cst_86 [1] : vector<16x16xf32> to vector<16xf32>
    %248 = vector.shape_cast %247 : vector<16xf32> to vector<16x1xf32>
    %249 = tpu.reciprocal %248 {approx = true} : vector<16x1xf32> -> vector<16x1xf32>
    %250 = vector.broadcast %249 : vector<16x1xf32> to vector<16x16xf32>
    %251 = arith.mulf %246, %250 : vector<16x16xf32>
    %252 = arith.truncf %251 : vector<16x16xf32> to vector<16x16xbf16>
    %cst_87 = arith.constant dense<0.000000e+00> : vector<16x8xf32>
    %253 = tpu.matmul %252, %239, %cst_87 {dimension_numbers = #tpu.dot_dimension_numbers<[1], [0], [0], [1], [0, 0, 1, 1], [], []>} : vector<16x16xbf16>, vector<16x8xbf16>, vector<16x8xf32> -> vector<16x8xf32>
    %c16_88 = arith.constant 16 : index
    %c48_89 = arith.constant 48 : index
    %254 = vector.load %arg9[%c16_88, %c48_89] : memref<32x56xf32, #tpu.memory_space<vmem>>, vector<16x8xf32>
    tpu.vector_store %arg9[%c16_88, %c48_89], %253 {strides = array<i32>} : memref<32x56xf32, #tpu.memory_space<vmem>>, vector<16x8xf32>,
    %c0_90 = arith.constant 0 : index
    %c0_91 = arith.constant 0 : index
    %255 = vector.load %arg9[%c0_90, %c0_91] : memref<32x56xf32, #tpu.memory_space<vmem>>, vector<32x56xf32>
    %256 = arith.truncf %255 : vector<32x56xf32> to vector<32x56xbf16>
    %c0_92 = arith.constant 0 : index
    %c0_93 = arith.constant 0 : index
    %257 = vector.load %arg6[%c0_92, %c0_93] : memref<56x32xbf16, #tpu.memory_space<vmem>>, vector<56x32xbf16>
    %cst_94 = arith.constant dense<0.000000e+00> : vector<32x32xf32>
    %258 = tpu.matmul %256, %257, %cst_94 {dimension_numbers = #tpu.dot_dimension_numbers<[1], [0], [0], [1], [0, 0, 1, 1], [], []>} : vector<32x56xbf16>, vector<56x32xbf16>, vector<32x32xf32> -> vector<32x32xf32>
    %c0_95 = arith.constant 0 : index
    %c0_96 = arith.constant 0 : index
    %259 = vector.load %arg7[%c0_95, %c0_96] : memref<1x32xf32, #tpu.memory_space<vmem>>, vector<1x32xf32>
    %260 = vector.broadcast %259 : vector<1x32xf32> to vector<32x32xf32>
    %261 = arith.addf %258, %260 : vector<32x32xf32>
    %cst_97 = arith.constant 0.000000e+00 : f32
    %262 = vector.broadcast %cst_97 : f32 to vector<32x32xf32>
    %263 = arith.maximumf %261, %262 : vector<32x32xf32>
    %264 = tpu.transpose %263, [1, 0] : vector<32x32xf32> -> vector<32x32xf32>
    %c0_98 = arith.constant 0 : index
    %c0_99 = arith.constant 0 : index
    %265 = vector.load %arg8[%c0_98, %c0_99] : memref<32x32xf32, #tpu.memory_space<vmem>>, vector<32x32xf32>
    tpu.vector_store %arg8[%c0_98, %c0_99], %264 {strides = array<i32>} : memref<32x32xf32, #tpu.memory_space<vmem>>, vector<32x32xf32>,
    return
  }
  func.func @transform_0(%arg0: i32) -> (i32, i32) {
    %c0_i32 = arith.constant 0 : i32
    %c0_i32_0 = arith.constant 0 : i32
    return %c0_i32, %arg0 : i32, i32
  }
  func.func @transform_1(%arg0: i32) -> (i32, i32) {
    %c0_i32 = arith.constant 0 : i32
    %c0_i32_0 = arith.constant 0 : i32
    %c0_i32_1 = arith.constant 0 : i32
    return %c0_i32, %c0_i32_0 : i32, i32
  }
  func.func @transform_2(%arg0: i32) -> (i32, i32) {
    %c0_i32 = arith.constant 0 : i32
    %c0_i32_0 = arith.constant 0 : i32
    %c0_i32_1 = arith.constant 0 : i32
    return %c0_i32, %c0_i32_0 : i32, i32
  }
  func.func @transform_3(%arg0: i32) -> (i32, i32) {
    %c0_i32 = arith.constant 0 : i32
    %c0_i32_0 = arith.constant 0 : i32
    %c0_i32_1 = arith.constant 0 : i32
    return %c0_i32, %c0_i32_0 : i32, i32
  }
  func.func @transform_4(%arg0: i32) -> (i32, i32) {
    %c0_i32 = arith.constant 0 : i32
    %c0_i32_0 = arith.constant 0 : i32
    %c0_i32_1 = arith.constant 0 : i32
    return %c0_i32, %c0_i32_0 : i32, i32
  }
  func.func @transform_5(%arg0: i32) -> (i32, i32) {
    %c0_i32 = arith.constant 0 : i32
    %c0_i32_0 = arith.constant 0 : i32
    %c0_i32_1 = arith.constant 0 : i32
    return %c0_i32, %c0_i32_0 : i32, i32
  }
  func.func @transform_6(%arg0: i32) -> (i32, i32) {
    %c0_i32 = arith.constant 0 : i32
    %c0_i32_0 = arith.constant 0 : i32
    %c0_i32_1 = arith.constant 0 : i32
    return %c0_i32, %c0_i32_0 : i32, i32
  }
  func.func @transform_7(%arg0: i32) -> (i32, i32) {
    %c0_i32 = arith.constant 0 : i32
    %c0_i32_0 = arith.constant 0 : i32
    return %c0_i32, %arg0 : i32, i32
  }
}

</mosaic_0001>

<llo_original>
// kernel: tpu_custom_call.1
$region0: #{tpu_custom_call.1}
  #allocation0 [shape = 'u32[]', space=smem, size = 0x4, offset = 0x4, fixed_abs, tag = 'smem constant byte address 0x4 - core index']
  #allocation1 [shape = 'u32[144,128]{1,0:T(1,128)}', space=vmem, size = 0x12000, scoped, tag = 'internal scratch']
  #allocation2 [shape = 'f32[32,56]{1,0:T(8,128)}', space=vmem, size = 0x4000, scoped, tag = 'scratch operand']
  %s0 = inlined_call_operand.vmem [shape: bf16[32,32], index: 0, kind: input, shape index: {}]
  %s1 = inlined_call_operand.vmem [shape: bf16[32,112], index: 1, kind: input, shape index: {}]
  %s2 = inlined_call_operand.vmem [shape: f32[1,112], index: 2, kind: input, shape index: {}]
  %s3 = inlined_call_operand.vmem [shape: bf16[56,32], index: 3, kind: input, shape index: {}]
  %s4 = inlined_call_operand.vmem [shape: f32[56,1], index: 4, kind: input, shape index: {}]
  %s5 = inlined_call_operand.vmem [shape: bf16[56,32], index: 5, kind: input, shape index: {}]
  %s6 = inlined_call_operand.vmem [shape: f32[1,32], index: 6, kind: input, shape index: {}]
  %s7 = inlined_call_operand.hbm [shape: f32[32,32], index: 7, kind: output, shape index: {}]
  %s8 = sld [smem:[#allocation0]]
  $region38: #{tpu_custom_call.1} parent=0
    _
  %s10 = ssub.s32 1, %s8
  %s11 = scalar_select 0, %s10, %s8
  $region1: #{tpu_custom_call.1} parent=0
    #allocation3 [shape = 'u8[16384]{0}', space=vmem, size = 0x4000, scoped, tag = 'output window, operand 0, single buffered']
    #allocation4 [shape = 's32[1]{0}', space=sflag, size = 0x4, scoped, tag = 'scoped memory for tpu_custom_call.1']
    %12 = vsyncpa [#allocation4], 0
    // Predicated region
    $region2: #{tpu_custom_call.1} parent=1 // pred_check
      _
    $region3: #{tpu_custom_call.1} parent=1 // pred_check_branch
      %14 = sbr.rel (0) target = $region5
    $region4: #{tpu_custom_call.1} parent=1 // pred_region
      _
    $region5: #{tpu_custom_call.1} parent=1 // pred_fallthru
      _
    // Predicated region
    $region6: #{tpu_custom_call.1} parent=1 // pred_check
      _
    $region7: #{tpu_custom_call.1} parent=1 // pred_check_branch
      %16 = sbr.rel (0) target = $region9
    $region8: #{tpu_custom_call.1} parent=1 // pred_region
      _
    $region9: #{tpu_custom_call.1} parent=1 // pred_fallthru
      _
    // Predicated region
    $region10: #{tpu_custom_call.1} parent=1 // pred_check
      _
    $region11: #{tpu_custom_call.1} parent=1 // pred_check_branch
      %18 = sbr.rel (0) target = $region13
    $region12: #{tpu_custom_call.1} parent=1 // pred_region
      _
    $region13: #{tpu_custom_call.1} parent=1 // pred_fallthru
      _
    // Predicated region
    $region14: #{tpu_custom_call.1} parent=1 // pred_check
      _
    $region15: #{tpu_custom_call.1} parent=1 // pred_check_branch
      %20 = sbr.rel (0) target = $region17
    $region16: #{tpu_custom_call.1} parent=1 // pred_region
      _
    $region17: #{tpu_custom_call.1} parent=1 // pred_fallthru
      _
    // Predicated region
    $region18: #{tpu_custom_call.1} parent=1 // pred_check
      _
    $region19: #{tpu_custom_call.1} parent=1 // pred_check_branch
      %22 = sbr.rel (0) target = $region21
    $region20: #{tpu_custom_call.1} parent=1 // pred_region
      _
    $region21: #{tpu_custom_call.1} parent=1 // pred_fallthru
      _
    // Predicated region
    $region22: #{tpu_custom_call.1} parent=1 // pred_check
      _
    $region23: #{tpu_custom_call.1} parent=1 // pred_check_branch
      %24 = sbr.rel (0) target = $region25
    $region24: #{tpu_custom_call.1} parent=1 // pred_region
      _
    $region25: #{tpu_custom_call.1} parent=1 // pred_fallthru
      _
    // Predicated region
    $region26: #{tpu_custom_call.1} parent=1 // pred_check
      _
    $region27: #{tpu_custom_call.1} parent=1 // pred_check_branch
      %26 = sbr.rel (0) target = $region29
    $region28: #{tpu_custom_call.1} parent=1 // pred_region
      _
    $region29: #{tpu_custom_call.1} parent=1 // pred_fallthru
      _
    %v28 = vld [vmem:[%s0] sm:$0xf]
    %v29 = vld [vmem:[%s0 + $0x4] sm:$0xf]
    %v30 = vld [vmem:[%s0 + $0x8] sm:$0xf]
    %v31 = vld [vmem:[%s0 + $0xc] sm:$0xf]
    %v32 = vld [vmem:[%s3] sm:$0xf]
    %v33 = vld [vmem:[%s3 + $0x4] sm:$0xf]
    %v34 = vld [vmem:[%s3 + $0x8] sm:$0xf]
    %v35 = vld [vmem:[%s3 + $0xc] sm:$0xf]
    %v36 = vld [vmem:[%s3 + $0x10] sm:$0xf]
    %v37 = vld [vmem:[%s3 + $0x14] sm:$0xf]
    %v38 = vld [vmem:[%s3 + $0x18] sm:$0xf]
    %v39 = vld [vmem:[%s4] sm:$0xff]
    %v40 = vld [vmem:[%s4 + $0x8] sm:$0xff]
    %v41 = vld [vmem:[%s4 + $0x10] sm:$0xff]
    %v42 = vld [vmem:[%s4 + $0x18] sm:$0xff]
    %v43 = vld [vmem:[%s4 + $0x20] sm:$0xff]
    %v44 = vld [vmem:[%s4 + $0x28] sm:$0xff]
    %v45 = vld [vmem:[%s4 + $0x30] sm:$0xff]
    %47 = vset.pattern.permute.xlu0 0
    %48 = vperm.xlu0 %47, %v39
    %v49 = vpop.permute.xlu0 %48
    %52 = vset.pattern.permute.xlu0 0
    %53 = vperm.xlu0 %52, %v40
    %v54 = vpop.permute.xlu0 %53
    %57 = vset.pattern.permute.xlu0 0
    %58 = vperm.xlu0 %57, %v41
    %v59 = vpop.permute.xlu0 %58
    %62 = vset.pattern.permute.xlu0 0
    %63 = vperm.xlu0 %62, %v42
    %v64 = vpop.permute.xlu0 %63
    %67 = vset.pattern.permute.xlu0 0
    %68 = vperm.xlu0 %67, %v43
    %v69 = vpop.permute.xlu0 %68
    %72 = vset.pattern.permute.xlu0 0
    %73 = vperm.xlu0 %72, %v44
    %v74 = vpop.permute.xlu0 %73
    %77 = vset.pattern.permute.xlu0 0
    %78 = vperm.xlu0 %77, %v45
    %v79 = vpop.permute.xlu0 %78
    %v88 = vunpack.c.l.b16 %v32
    %v89 = vunpack.c.l.b16 %v33
    %v90 = vunpack.c.l.b16 %v34
    %v91 = vunpack.c.l.b16 %v35
    %v92 = vunpack.c.l.b16 %v36
    %v93 = vunpack.c.l.b16 %v37
    %v94 = vunpack.c.l.b16 %v38
    %v95 = vpack.c.b16 %v89, %v88
    %v96 = vpack.c.b16 %v91, %v90
    %v97 = vpack.c.b16 %v93, %v92
    %v98 = vpack.c.b16 %v94, %v94
    %v103 = vunpack.c.l.b16 %v28
    %v104 = vunpack.c.l.b16 %v29
    %v105 = vunpack.c.l.b16 %v30
    %v106 = vunpack.c.l.b16 %v31
    %v107 = vpack.c.b16 %v104, %v103
    %v108 = vpack.c.b16 %v106, %v105
    %vm111 = vcmask 261120
    %v113 = vsel %vm111, %v95, 0
    %v116 = vsel %vm111, %v96, 0
    %v119 = vsel %vm111, %v97, 0
    %v122 = vsel %vm111, %v98, 0
    %124 = vmatprep.subr.bf16.mxu0 0
    %125 = vmatpush1.bf16.msra.mxu0 0
    %126 = vmatprep.subr.bf16.mxu0 0
    %127 = vmatpush1.bf16.msra.mxu0 0
    %128 = vmatprep.subr.bf16.mxu0 0
    %129 = vmatpush1.bf16.msra.mxu0 0
    %130 = vmatprep.subr.bf16.mxu0 0
    %131 = vmatpush1.bf16.msra.mxu0 0
    %132 = vmatprep.subr.bf16.mxu0 0
    %133 = vmatpush1.bf16.msra.mxu0 0
    %134 = vmatprep.subr.bf16.mxu0 0
    %135 = vmatpush1.bf16.msra.mxu0 0
    %136 = vmatprep.subr.bf16.mxu0 0
    %137 = vmatpush1.bf16.msra.mxu0 %v108
    %138 = vmatprep.subr.bf16.mxu0 0
    %139 = vmatpush1.bf16.msra.mxu0 %v107
    %140 = vmatprep.subr.bf16.mxu0 0
    %141 = vmatpush2.bf16.msra.mxu0 0
    %142 = vmatprep.subr.bf16.mxu0 0
    %143 = vmatpush2.bf16.msra.mxu0 0
    %144 = vmatprep.subr.bf16.mxu0 0
    %145 = vmatpush2.bf16.msra.mxu0 0
    %146 = vmatprep.subr.bf16.mxu0 0
    %147 = vmatpush2.bf16.msra.mxu0 0
    %148 = vmatprep.subr.bf16.mxu0 0
    %149 = vmatpush2.bf16.msra.mxu0 0
    %150 = vmatprep.subr.bf16.mxu0 0
    %151 = vmatpush2.bf16.msra.mxu0 0
    %152 = vmatprep.subr.bf16.mxu0 0
    %153 = vmatpush2.bf16.msra.mxu0 0
    %154 = vmatprep.subr.bf16.mxu0 0
    %155 = vmatpush2.bf16.msra.mxu0 0
    %156 = vmatprep.mubr.bf16.mxu0 0
    %157 = vmatmul.mubr.bf16.gmra.mxu0 %v113
    %v158 = vpop.f32.mrf.mxu0
    %v159 = vadd.f32 %v49, %v158
    %v160 = vpop.f32.mrf.mxu0
    %v161 = vpop.f32.mrf.mxu0
    %v162 = vadd.f32 %v54, %v161
    %v163 = vpop.f32.mrf.mxu0
    %164 = vmatprep.mubr.bf16.mxu0 0
    %165 = vmatmul.mubr.bf16.gmra.mxu0 %v116
    %v166 = vpop.f32.mrf.mxu0
    %v167 = vadd.f32 %v59, %v166
    %v168 = vpop.f32.mrf.mxu0
    %v169 = vpop.f32.mrf.mxu0
    %v170 = vadd.f32 %v64, %v169
    %v171 = vpop.f32.mrf.mxu0
    %172 = vmatprep.mubr.bf16.mxu0 0
    %173 = vmatmul.mubr.bf16.gmra.mxu0 %v119
    %v174 = vpop.f32.mrf.mxu0
    %v175 = vadd.f32 %v69, %v174
    %v176 = vpop.f32.mrf.mxu0
    %v177 = vpop.f32.mrf.mxu0
    %v178 = vadd.f32 %v74, %v177
    %v179 = vpop.f32.mrf.mxu0
    %180 = vmatprep.mubr.bf16.mxu0 0
    %181 = vmatmul.mubr.bf16.gmra.mxu0 %v122
    %v182 = vpop.f32.mrf.mxu0
    %v183 = vadd.f32 %v79, %v182
    %v184 = vpop.f32.mrf.mxu0
    %v185 = vpop.f32.mrf.mxu0
    %v186 = vpop.f32.mrf.mxu0
    %187 = vdwg.mxu0
    %v188 = vmax.f32 %v159, 0.0
    %v189 = vmax.f32 %v162, 0.0
    %v190 = vmax.f32 %v167, 0.0
    %v191 = vmax.f32 %v170, 0.0
    %v192 = vmax.f32 %v175, 0.0
    %v193 = vmax.f32 %v178, 0.0
    %v194 = vmax.f32 %v183, 0.0
    %v195 = vpack.c.bf16 %v189, %v188
    %v196 = vpack.c.bf16 %v191, %v190
    %v197 = vpack.c.bf16 %v193, %v192
    %v198 = vpack.c.bf16 %v194, %v194
    %v199 = vld [vmem:[%s1] sm:$0xf]
    %v200 = vld [vmem:[%s1 + $0x4] sm:$0xf]
    %v201 = vld [vmem:[%s1 + $0x8] sm:$0xf]
    %v202 = vld [vmem:[%s1 + $0xc] sm:$0xf]
    %v203 = vld [vmem:[%s2] sm:$0x1]
    %v205 = vlaneseq
    %v206 = vshrl.u32 %v205, 7
    %v207 = vsub.s32 0, %v206
    %v208 = vrot.slane %v203, %v207
    %210 = vxpose.xlu0.c.b16.start [1/8] %v107, 128
    %211 = vxpose.xlu0.c.b16.cont [2/8] %v108, 128
    %212 = vxpose.xlu0.c.b16.cont [3/8] 0, 128
    %213 = vxpose.xlu0.c.b16.cont [4/8] 0, 128
    %214 = vxpose.xlu0.c.b16.cont [5/8] 0, 128
    %215 = vxpose.xlu0.c.b16.cont [6/8] 0, 128
    %216 = vxpose.xlu0.c.b16.cont [7/8] 0, 128
    %217 = vxpose.xlu0.c.b16.end [8/8] 0, 128
    %v218 = vpop.trf.xlu0
    %v219 = vpop.trf.xlu0
    %v220 = vpop.trf.xlu0
    %v221 = vpop.trf.xlu0
    %v222 = vpop.trf.xlu0
    %v223 = vpop.trf.xlu0
    %v224 = vpop.trf.xlu0
    %v225 = vpop.trf.xlu0
    %v230 = vunpack.c.l.b16 %v199
    %v231 = vunpack.c.l.b16 %v200
    %v232 = vunpack.c.l.b16 %v201
    %v233 = vunpack.c.l.b16 %v202
    %v234 = vpack.c.b16 %v231, %v230
    %v235 = vpack.c.b16 %v233, %v232
    %v239 = vsel %vm111, %v218, 0
    %v242 = vsel %vm111, %v219, 0
    %244 = vmatprep.subr.bf16.mxu0 0
    %245 = vmatpush1.bf16.msra.mxu0 0
    %246 = vmatprep.subr.bf16.mxu0 0
    %247 = vmatpush1.bf16.msra.mxu0 0
    %248 = vmatprep.subr.bf16.mxu0 0
    %249 = vmatpush1.bf16.msra.mxu0 0
    %250 = vmatprep.subr.bf16.mxu0 0
    %251 = vmatpush1.bf16.msra.mxu0 0
    %252 = vmatprep.subr.bf16.mxu0 0
    %253 = vmatpush1.bf16.msra.mxu0 0
    %254 = vmatprep.subr.bf16.mxu0 0
    %255 = vmatpush1.bf16.msra.mxu0 0
    %256 = vmatprep.subr.bf16.mxu0 0
    %257 = vmatpush1.bf16.msra.mxu0 %v235
    %258 = vmatprep.subr.bf16.mxu0 0
    %259 = vmatpush1.bf16.msra.mxu0 %v234
    %260 = vmatprep.subr.bf16.mxu0 0
    %261 = vmatpush2.bf16.msra.mxu0 0
    %262 = vmatprep.subr.bf16.mxu0 0
    %263 = vmatpush2.bf16.msra.mxu0 0
    %264 = vmatprep.subr.bf16.mxu0 0
    %265 = vmatpush2.bf16.msra.mxu0 0
    %266 = vmatprep.subr.bf16.mxu0 0
    %267 = vmatpush2.bf16.msra.mxu0 0
    %268 = vmatprep.subr.bf16.mxu0 0
    %269 = vmatpush2.bf16.msra.mxu0 0
    %270 = vmatprep.subr.bf16.mxu0 0
    %271 = vmatpush2.bf16.msra.mxu0 0
    %272 = vmatprep.subr.bf16.mxu0 0
    %273 = vmatpush2.bf16.msra.mxu0 0
    %274 = vmatprep.subr.bf16.mxu0 0
    %275 = vmatpush2.bf16.msra.mxu0 0
    %276 = vmatprep.mubr.bf16.mxu0 0
    %277 = vmatmul.mubr.bf16.gmra.mxu0 %v239
    %v278 = vpop.f32.mrf.mxu0
    %v279 = vadd.f32 %v208, %v278
    %v280 = vpop.f32.mrf.mxu0
    %v281 = vpop.f32.mrf.mxu0
    %v282 = vadd.f32 %v208, %v281
    %v283 = vpop.f32.mrf.mxu0
    %284 = vmatprep.mubr.bf16.mxu0 0
    %285 = vmatmul.mubr.bf16.gmra.mxu0 %v242
    %v286 = vpop.f32.mrf.mxu0
    %v287 = vadd.f32 %v208, %v286
    %v288 = vpop.f32.mrf.mxu0
    %v289 = vpop.f32.mrf.mxu0
    %v290 = vadd.f32 %v208, %v289
    %v291 = vpop.f32.mrf.mxu0
    %292 = vdwg.mxu0
    %v293 = vmax.f32 %v279, 0.0
    %v294 = vmax.f32 %v282, 0.0
    %v295 = vmax.f32 %v287, 0.0
    %v296 = vmax.f32 %v290, 0.0
    %v297 = vpack.c.bf16 %v294, %v293
    %v298 = vpack.c.bf16 %v296, %v295
    %vm299 = vcmask 64512
    %v301 = vsel %vm299, %v297, 0
    %vm303 = vcmask 1043456
    %v305 = vsel %vm303, %v195, 0
    %307 = vmatprep.subr.bf16.mxu0 0
    %308 = vmatpush1.bf16.msra.mxu0 0
    %309 = vmatprep.subr.bf16.mxu0 0
    %310 = vmatpush1.bf16.msra.mxu0 0
    %311 = vmatprep.subr.bf16.mxu0 0
    %312 = vmatpush1.bf16.msra.mxu0 0
    %313 = vmatprep.subr.bf16.mxu0 0
    %314 = vmatpush1.bf16.msra.mxu0 0
    %315 = vmatprep.subr.bf16.mxu0 0
    %316 = vmatpush1.bf16.msra.mxu0 0
    %317 = vmatprep.subr.bf16.mxu0 0
    %318 = vmatpush1.bf16.msra.mxu0 0
    %319 = vmatprep.subr.bf16.mxu0 0
    %320 = vmatpush1.bf16.msra.mxu0 0
    %321 = vmatprep.subr.bf16.mxu0 0
    %322 = vmatpush1.bf16.msra.mxu0 %v305
    %323 = vmatprep.subr.bf16.mxu0 0
    %324 = vmatpush2.bf16.msra.mxu0 0
    %325 = vmatprep.subr.bf16.mxu0 0
    %326 = vmatpush2.bf16.msra.mxu0 0
    %327 = vmatprep.subr.bf16.mxu0 0
    %328 = vmatpush2.bf16.msra.mxu0 0
    %329 = vmatprep.subr.bf16.mxu0 0
    %330 = vmatpush2.bf16.msra.mxu0 0
    %331 = vmatprep.subr.bf16.mxu0 0
    %332 = vmatpush2.bf16.msra.mxu0 0
    %333 = vmatprep.subr.bf16.mxu0 0
    %334 = vmatpush2.bf16.msra.mxu0 0
    %335 = vmatprep.subr.bf16.mxu0 0
    %336 = vmatpush2.bf16.msra.mxu0 0
    %337 = vmatprep.subr.bf16.mxu0 0
    %338 = vmatpush2.bf16.msra.mxu0 0
    %339 = vmatprep.mubr.bf16.mxu0 0
    %340 = vmatmul.mubr.bf16.gmra.mxu0 %v301
    %v341 = vpop.f32.mrf.mxu0
    %v342 = vadd.f32 0.0, %v341
    %v343 = vpop.f32.mrf.mxu0
    %v344 = vpop.f32.mrf.mxu0
    %v345 = vadd.f32 0.0, %v344
    %v346 = vpop.f32.mrf.mxu0
    %347 = vdwg.mxu0
    %vm348 = vcmask 130048
    %v349 = vsel %vm348, %v342, -inf
    %350 = vmax.xlane.f32.xlu0 %v349
    %v351 = vpop.xlane.xlu0 %350
    %v352 = vsel %vm348, %v345, -inf
    %353 = vmax.xlane.f32.xlu0 %v352
    %v354 = vpop.xlane.xlu0 %353
    %v355 = vsub.f32 %v342, %v351
    %v356 = vsub.f32 %v345, %v354
    %v357 = vmul.f32 %v355, 1.442695
    %v358 = vpow.pop %v357
    %v359 = vmul.f32 %v356, 1.442695
    %v360 = vpow.pop %v359
    %v361 = vsel %vm348, %v358, 0.0
    %362 = vadd.xlane.f32.xlu0 %v361
    %v363 = vpop.xlane.xlu0 %362
    %v364 = vsel %vm348, %v360, 0.0
    %365 = vadd.xlane.f32.xlu0 %v364
    %v366 = vpop.xlane.xlu0 %365
    %v367 = vrcp.pop %v363
    %v368 = vrcp.pop %v366
    %v369 = vmul.f32 %v358, %v367
    %v370 = vmul.f32 %v360, %v368
    %v371 = vpack.c.bf16 %v370, %v369
    %373 = vrot.lane.b32.xlu0 %v297, 72
    %v374 = vpop.permute.xlu0 %373
    %v377 = vsel %vm348, %v371, 0
    %379 = vmatprep.subr.bf16.mxu0 0
    %380 = vmatpush1.bf16.msra.mxu0 0
    %381 = vmatprep.subr.bf16.mxu0 0
    %382 = vmatpush1.bf16.msra.mxu0 0
    %383 = vmatprep.subr.bf16.mxu0 0
    %384 = vmatpush1.bf16.msra.mxu0 0
    %385 = vmatprep.subr.bf16.mxu0 0
    %386 = vmatpush1.bf16.msra.mxu0 0
    %387 = vmatprep.subr.bf16.mxu0 0
    %388 = vmatpush1.bf16.msra.mxu0 0
    %389 = vmatprep.subr.bf16.mxu0 0
    %390 = vmatpush1.bf16.msra.mxu0 0
    %391 = vmatprep.subr.bf16.mxu0 0
    %392 = vmatpush1.bf16.msra.mxu0 0
    %393 = vmatprep.subr.bf16.mxu0 0
    %394 = vmatpush1.bf16.msra.mxu0 %v374
    %395 = vmatprep.subr.bf16.mxu0 0
    %396 = vmatpush2.bf16.msra.mxu0 0
    %397 = vmatprep.subr.bf16.mxu0 0
    %398 = vmatpush2.bf16.msra.mxu0 0
    %399 = vmatprep.subr.bf16.mxu0 0
    %400 = vmatpush2.bf16.msra.mxu0 0
    %401 = vmatprep.subr.bf16.mxu0 0
    %402 = vmatpush2.bf16.msra.mxu0 0
    %403 = vmatprep.subr.bf16.mxu0 0
    %404 = vmatpush2.bf16.msra.mxu0 0
    %405 = vmatprep.subr.bf16.mxu0 0
    %406 = vmatpush2.bf16.msra.mxu0 0
    %407 = vmatprep.subr.bf16.mxu0 0
    %408 = vmatpush2.bf16.msra.mxu0 0
    %409 = vmatprep.subr.bf16.mxu0 0
    %410 = vmatpush2.bf16.msra.mxu0 0
    %411 = vmatprep.mubr.bf16.mxu0 0
    %412 = vmatmul.mubr.bf16.gmra.mxu0 %v377
    %v413 = vpop.f32.mrf.mxu0
    %v414 = vadd.f32 0.0, %v413
    %v415 = vpop.f32.mrf.mxu0
    %v416 = vpop.f32.mrf.mxu0
    %v417 = vadd.f32 0.0, %v416
    %v418 = vpop.f32.mrf.mxu0
    %419 = vdwg.mxu0
    %420 = vst.msk [vmem:[#allocation2] sm:$0xff] %vm299, %v414
    %421 = vst.msk [vmem:[#allocation2 + $0x8] sm:$0xff] %vm299, %v417
    %422 = vrot.lane.b32.xlu0 %v297, 120
    %v423 = vpop.permute.xlu0 %422
    %v425 = vrot.slane %v195, 4
    %v427 = vsel %vm299, %v423, 0
    %v430 = vsel %vm303, %v425, 0
    %432 = vmatprep.subr.bf16.mxu0 0
    %433 = vmatpush1.bf16.msra.mxu0 0
    %434 = vmatprep.subr.bf16.mxu0 0
    %435 = vmatpush1.bf16.msra.mxu0 0
    %436 = vmatprep.subr.bf16.mxu0 0
    %437 = vmatpush1.bf16.msra.mxu0 0
    %438 = vmatprep.subr.bf16.mxu0 0
    %439 = vmatpush1.bf16.msra.mxu0 0
    %440 = vmatprep.subr.bf16.mxu0 0
    %441 = vmatpush1.bf16.msra.mxu0 0
    %442 = vmatprep.subr.bf16.mxu0 0
    %443 = vmatpush1.bf16.msra.mxu0 0
    %444 = vmatprep.subr.bf16.mxu0 0
    %445 = vmatpush1.bf16.msra.mxu0 0
    %446 = vmatprep.subr.bf16.mxu0 0
    %447 = vmatpush1.bf16.msra.mxu0 %v430
    %448 = vmatprep.subr.bf16.mxu0 0
    %449 = vmatpush2.bf16.msra.mxu0 0
    %450 = vmatprep.subr.bf16.mxu0 0
    %451 = vmatpush2.bf16.msra.mxu0 0
    %452 = vmatprep.subr.bf16.mxu0 0
    %453 = vmatpush2.bf16.msra.mxu0 0
    %454 = vmatprep.subr.bf16.mxu0 0
    %455 = vmatpush2.bf16.msra.mxu0 0
    %456 = vmatprep.subr.bf16.mxu0 0
    %457 = vmatpush2.bf16.msra.mxu0 0
    %458 = vmatprep.subr.bf16.mxu0 0
    %459 = vmatpush2.bf16.msra.mxu0 0
    %460 = vmatprep.subr.bf16.mxu0 0
    %461 = vmatpush2.bf16.msra.mxu0 0
    %462 = vmatprep.subr.bf16.mxu0 0
    %463 = vmatpush2.bf16.msra.mxu0 0
    %464 = vmatprep.mubr.bf16.mxu0 0
    %465 = vmatmul.mubr.bf16.gmra.mxu0 %v427
    %v466 = vpop.f32.mrf.mxu0
    %v467 = vadd.f32 0.0, %v466
    %v468 = vpop.f32.mrf.mxu0
    %v469 = vpop.f32.mrf.mxu0
    %v470 = vadd.f32 0.0, %v469
    %v471 = vpop.f32.mrf.mxu0
    %472 = vdwg.mxu0
    %v473 = vsel %vm348, %v467, -inf
    %474 = vmax.xlane.f32.xlu0 %v473
    %v475 = vpop.xlane.xlu0 %474
    %v476 = vsel %vm348, %v470, -inf
    %477 = vmax.xlane.f32.xlu0 %v476
    %v478 = vpop.xlane.xlu0 %477
    %v479 = vsub.f32 %v467, %v475
    %v480 = vsub.f32 %v470, %v478
    %v481 = vmul.f32 %v479, 1.442695
    %v482 = vpow.pop %v481
    %v483 = vmul.f32 %v480, 1.442695
    %v484 = vpow.pop %v483
    %v485 = vsel %vm348, %v482, 0.0
    %486 = vadd.xlane.f32.xlu0 %v485
    %v487 = vpop.xlane.xlu0 %486
    %v488 = vsel %vm348, %v484, 0.0
    %489 = vadd.xlane.f32.xlu0 %v488
    %v490 = vpop.xlane.xlu0 %489
    %v491 = vrcp.pop %v487
    %v492 = vrcp.pop %v490
    %v493 = vmul.f32 %v482, %v491
    %v494 = vmul.f32 %v484, %v492
    %v495 = vpack.c.bf16 %v494, %v493
    %496 = vrot.lane.b32.xlu0 %v297, 64
    %v497 = vpop.permute.xlu0 %496
    %v500 = vsel %vm348, %v495, 0
    %502 = vmatprep.subr.bf16.mxu0 0
    %503 = vmatpush1.bf16.msra.mxu0 0
    %504 = vmatprep.subr.bf16.mxu0 0
    %505 = vmatpush1.bf16.msra.mxu0 0
    %506 = vmatprep.subr.bf16.mxu0 0
    %507 = vmatpush1.bf16.msra.mxu0 0
    %508 = vmatprep.subr.bf16.mxu0 0
    %509 = vmatpush1.bf16.msra.mxu0 0
    %510 = vmatprep.subr.bf16.mxu0 0
    %511 = vmatpush1.bf16.msra.mxu0 0
    %512 = vmatprep.subr.bf16.mxu0 0
    %513 = vmatpush1.bf16.msra.mxu0 0
    %514 = vmatprep.subr.bf16.mxu0 0
    %515 = vmatpush1.bf16.msra.mxu0 0
    %516 = vmatprep.subr.bf16.mxu0 0
    %517 = vmatpush1.bf16.msra.mxu0 %v497
    %518 = vmatprep.subr.bf16.mxu0 0
    %519 = vmatpush2.bf16.msra.mxu0 0
    %520 = vmatprep.subr.bf16.mxu0 0
    %521 = vmatpush2.bf16.msra.mxu0 0
    %522 = vmatprep.subr.bf16.mxu0 0
    %523 = vmatpush2.bf16.msra.mxu0 0
    %524 = vmatprep.subr.bf16.mxu0 0
    %525 = vmatpush2.bf16.msra.mxu0 0
    %526 = vmatprep.subr.bf16.mxu0 0
    %527 = vmatpush2.bf16.msra.mxu0 0
    %528 = vmatprep.subr.bf16.mxu0 0
    %529 = vmatpush2.bf16.msra.mxu0 0
    %530 = vmatprep.subr.bf16.mxu0 0
    %531 = vmatpush2.bf16.msra.mxu0 0
    %532 = vmatprep.subr.bf16.mxu0 0
    %533 = vmatpush2.bf16.msra.mxu0 0
    %534 = vmatprep.mubr.bf16.mxu0 0
    %535 = vmatmul.mubr.bf16.gmra.mxu0 %v500
    %v536 = vpop.f32.mrf.mxu0
    %v537 = vadd.f32 0.0, %v536
    %v538 = vpop.f32.mrf.mxu0
    %v539 = vpop.f32.mrf.mxu0
    %v540 = vadd.f32 0.0, %v539
    %v541 = vpop.f32.mrf.mxu0
    %542 = vdwg.mxu0
    %545 = vrot.lane.b32.xlu0 %v537, 8
    %v546 = vpop.permute.xlu0 %545
    %547 = vrot.lane.b32.xlu0 %v540, 8
    %v548 = vpop.permute.xlu0 %547
    %vm551 = vcmask 130112
    %552 = vst.msk [vmem:[#allocation2] sm:$0xff] %vm551, %v546
    %553 = vst.msk [vmem:[#allocation2 + $0x8] sm:$0xff] %vm551, %v548
    %554 = vrot.lane.b32.xlu0 %v297, 112
    %v555 = vpop.permute.xlu0 %554
    %v557 = vsel %vm299, %v555, 0
    %v560 = vsel %vm303, %v196, 0
    %562 = vmatprep.subr.bf16.mxu0 0
    %563 = vmatpush1.bf16.msra.mxu0 0
    %564 = vmatprep.subr.bf16.mxu0 0
    %565 = vmatpush1.bf16.msra.mxu0 0
    %566 = vmatprep.subr.bf16.mxu0 0
    %567 = vmatpush1.bf16.msra.mxu0 0
    %568 = vmatprep.subr.bf16.mxu0 0
    %569 = vmatpush1.bf16.msra.mxu0 0
    %570 = vmatprep.subr.bf16.mxu0 0
    %571 = vmatpush1.bf16.msra.mxu0 0
    %572 = vmatprep.subr.bf16.mxu0 0
    %573 = vmatpush1.bf16.msra.mxu0 0
    %574 = vmatprep.subr.bf16.mxu0 0
    %575 = vmatpush1.bf16.msra.mxu0 0
    %576 = vmatprep.subr.bf16.mxu0 0
    %577 = vmatpush1.bf16.msra.mxu0 %v560
    %578 = vmatprep.subr.bf16.mxu0 0
    %579 = vmatpush2.bf16.msra.mxu0 0
    %580 = vmatprep.subr.bf16.mxu0 0
    %581 = vmatpush2.bf16.msra.mxu0 0
    %582 = vmatprep.subr.bf16.mxu0 0
    %583 = vmatpush2.bf16.msra.mxu0 0
    %584 = vmatprep.subr.bf16.mxu0 0
    %585 = vmatpush2.bf16.msra.mxu0 0
    %586 = vmatprep.subr.bf16.mxu0 0
    %587 = vmatpush2.bf16.msra.mxu0 0
    %588 = vmatprep.subr.bf16.mxu0 0
    %589 = vmatpush2.bf16.msra.mxu0 0
    %590 = vmatprep.subr.bf16.mxu0 0
    %591 = vmatpush2.bf16.msra.mxu0 0
    %592 = vmatprep.subr.bf16.mxu0 0
    %593 = vmatpush2.bf16.msra.mxu0 0
    %594 = vmatprep.mubr.bf16.mxu0 0
    %595 = vmatmul.mubr.bf16.gmra.mxu0 %v557
    %v596 = vpop.f32.mrf.mxu0
    %v597 = vadd.f32 0.0, %v596
    %v598 = vpop.f32.mrf.mxu0
    %v599 = vpop.f32.mrf.mxu0
    %v600 = vadd.f32 0.0, %v599
    %v601 = vpop.f32.mrf.mxu0
    %602 = vdwg.mxu0
    %v603 = vsel %vm348, %v597, -inf
    %604 = vmax.xlane.f32.xlu0 %v603
    %v605 = vpop.xlane.xlu0 %604
    %v606 = vsel %vm348, %v600, -inf
    %607 = vmax.xlane.f32.xlu0 %v606
    %v608 = vpop.xlane.xlu0 %607
    %v609 = vsub.f32 %v597, %v605
    %v610 = vsub.f32 %v600, %v608
    %v611 = vmul.f32 %v609, 1.442695
    %v612 = vpow.pop %v611
    %v613 = vmul.f32 %v610, 1.442695
    %v614 = vpow.pop %v613
    %v615 = vsel %vm348, %v612, 0.0
    %616 = vadd.xlane.f32.xlu0 %v615
    %v617 = vpop.xlane.xlu0 %616
    %v618 = vsel %vm348, %v614, 0.0
    %619 = vadd.xlane.f32.xlu0 %v618
    %v620 = vpop.xlane.xlu0 %619
    %v621 = vrcp.pop %v617
    %v622 = vrcp.pop %v620
    %v623 = vmul.f32 %v612, %v621
    %v624 = vmul.f32 %v614, %v622
    %v625 = vpack.c.bf16 %v624, %v623
    %626 = vrot.lane.b32.xlu0 %v297, 56
    %v627 = vpop.permute.xlu0 %626
    %v630 = vsel %vm348, %v625, 0
    %632 = vmatprep.subr.bf16.mxu0 0
    %633 = vmatpush1.bf16.msra.mxu0 0
    %634 = vmatprep.subr.bf16.mxu0 0
    %635 = vmatpush1.bf16.msra.mxu0 0
    %636 = vmatprep.subr.bf16.mxu0 0
    %637 = vmatpush1.bf16.msra.mxu0 0
    %638 = vmatprep.subr.bf16.mxu0 0
    %639 = vmatpush1.bf16.msra.mxu0 0
    %640 = vmatprep.subr.bf16.mxu0 0
    %641 = vmatpush1.bf16.msra.mxu0 0
    %642 = vmatprep.subr.bf16.mxu0 0
    %643 = vmatpush1.bf16.msra.mxu0 0
    %644 = vmatprep.subr.bf16.mxu0 0
    %645 = vmatpush1.bf16.msra.mxu0 0
    %646 = vmatprep.subr.bf16.mxu0 0
    %647 = vmatpush1.bf16.msra.mxu0 %v627
    %648 = vmatprep.subr.bf16.mxu0 0
    %649 = vmatpush2.bf16.msra.mxu0 0
    %650 = vmatprep.subr.bf16.mxu0 0
    %651 = vmatpush2.bf16.msra.mxu0 0
    %652 = vmatprep.subr.bf16.mxu0 0
    %653 = vmatpush2.bf16.msra.mxu0 0
    %654 = vmatprep.subr.bf16.mxu0 0
    %655 = vmatpush2.bf16.msra.mxu0 0
    %656 = vmatprep.subr.bf16.mxu0 0
    %657 = vmatpush2.bf16.msra.mxu0 0
    %658 = vmatprep.subr.bf16.mxu0 0
    %659 = vmatpush2.bf16.msra.mxu0 0
    %660 = vmatprep.subr.bf16.mxu0 0
    %661 = vmatpush2.bf16.msra.mxu0 0
    %662 = vmatprep.subr.bf16.mxu0 0
    %663 = vmatpush2.bf16.msra.mxu0 0
    %664 = vmatprep.mubr.bf16.mxu0 0
    %665 = vmatmul.mubr.bf16.gmra.mxu0 %v630
    %v666 = vpop.f32.mrf.mxu0
    %v667 = vadd.f32 0.0, %v666
    %v668 = vpop.f32.mrf.mxu0
    %v669 = vpop.f32.mrf.mxu0
    %v670 = vadd.f32 0.0, %v669
    %v671 = vpop.f32.mrf.mxu0
    %672 = vdwg.mxu0
    %675 = vrot.lane.b32.xlu0 %v667, 16
    %v676 = vpop.permute.xlu0 %675
    %677 = vrot.lane.b32.xlu0 %v670, 16
    %v678 = vpop.permute.xlu0 %677
    %vm681 = vcmask 195712
    %682 = vst.msk [vmem:[#allocation2] sm:$0xff] %vm681, %v676
    %683 = vst.msk [vmem:[#allocation2 + $0x8] sm:$0xff] %vm681, %v678
    %684 = vrot.lane.b32.xlu0 %v297, 104
    %v685 = vpop.permute.xlu0 %684
    %v687 = vrot.slane %v196, 4
    %v689 = vsel %vm299, %v685, 0
    %v692 = vsel %vm303, %v687, 0
    %694 = vmatprep.subr.bf16.mxu0 0
    %695 = vmatpush1.bf16.msra.mxu0 0
    %696 = vmatprep.subr.bf16.mxu0 0
    %697 = vmatpush1.bf16.msra.mxu0 0
    %698 = vmatprep.subr.bf16.mxu0 0
    %699 = vmatpush1.bf16.msra.mxu0 0
    %700 = vmatprep.subr.bf16.mxu0 0
    %701 = vmatpush1.bf16.msra.mxu0 0
    %702 = vmatprep.subr.bf16.mxu0 0
    %703 = vmatpush1.bf16.msra.mxu0 0
    %704 = vmatprep.subr.bf16.mxu0 0
    %705 = vmatpush1.bf16.msra.mxu0 0
    %706 = vmatprep.subr.bf16.mxu0 0
    %707 = vmatpush1.bf16.msra.mxu0 0
    %708 = vmatprep.subr.bf16.mxu0 0
    %709 = vmatpush1.bf16.msra.mxu0 %v692
    %710 = vmatprep.subr.bf16.mxu0 0
    %711 = vmatpush2.bf16.msra.mxu0 0
    %712 = vmatprep.subr.bf16.mxu0 0
    %713 = vmatpush2.bf16.msra.mxu0 0
    %714 = vmatprep.subr.bf16.mxu0 0
    %715 = vmatpush2.bf16.msra.mxu0 0
    %716 = vmatprep.subr.bf16.mxu0 0
    %717 = vmatpush2.bf16.msra.mxu0 0
    %718 = vmatprep.subr.bf16.mxu0 0
    %719 = vmatpush2.bf16.msra.mxu0 0
    %720 = vmatprep.subr.bf16.mxu0 0
    %721 = vmatpush2.bf16.msra.mxu0 0
    %722 = vmatprep.subr.bf16.mxu0 0
    %723 = vmatpush2.bf16.msra.mxu0 0
    %724 = vmatprep.subr.bf16.mxu0 0
    %725 = vmatpush2.bf16.msra.mxu0 0
    %726 = vmatprep.mubr.bf16.mxu0 0
    %727 = vmatmul.mubr.bf16.gmra.mxu0 %v689
    %v728 = vpop.f32.mrf.mxu0
    %v729 = vadd.f32 0.0, %v728
    %v730 = vpop.f32.mrf.mxu0
    %v731 = vpop.f32.mrf.mxu0
    %v732 = vadd.f32 0.0, %v731
    %v733 = vpop.f32.mrf.mxu0
    %734 = vdwg.mxu0
    %v735 = vsel %vm348, %v729, -inf
    %736 = vmax.xlane.f32.xlu0 %v735
    %v737 = vpop.xlane.xlu0 %736
    %v738 = vsel %vm348, %v732, -inf
    %739 = vmax.xlane.f32.xlu0 %v738
    %v740 = vpop.xlane.xlu0 %739
    %v741 = vsub.f32 %v729, %v737
    %v742 = vsub.f32 %v732, %v740
    %v743 = vmul.f32 %v741, 1.442695
    %v744 = vpow.pop %v743
    %v745 = vmul.f32 %v742, 1.442695
    %v746 = vpow.pop %v745
    %v747 = vsel %vm348, %v744, 0.0
    %748 = vadd.xlane.f32.xlu0 %v747
    %v749 = vpop.xlane.xlu0 %748
    %v750 = vsel %vm348, %v746, 0.0
    %751 = vadd.xlane.f32.xlu0 %v750
    %v752 = vpop.xlane.xlu0 %751
    %v753 = vrcp.pop %v749
    %v754 = vrcp.pop %v752
    %v755 = vmul.f32 %v744, %v753
    %v756 = vmul.f32 %v746, %v754
    %v757 = vpack.c.bf16 %v756, %v755
    %758 = vrot.lane.b32.xlu0 %v297, 48
    %v759 = vpop.permute.xlu0 %758
    %v762 = vsel %vm348, %v757, 0
    %764 = vmatprep.subr.bf16.mxu0 0
    %765 = vmatpush1.bf16.msra.mxu0 0
    %766 = vmatprep.subr.bf16.mxu0 0
    %767 = vmatpush1.bf16.msra.mxu0 0
    %768 = vmatprep.subr.bf16.mxu0 0
    %769 = vmatpush1.bf16.msra.mxu0 0
    %770 = vmatprep.subr.bf16.mxu0 0
    %771 = vmatpush1.bf16.msra.mxu0 0
    %772 = vmatprep.subr.bf16.mxu0 0
    %773 = vmatpush1.bf16.msra.mxu0 0
    %774 = vmatprep.subr.bf16.mxu0 0
    %775 = vmatpush1.bf16.msra.mxu0 0
    %776 = vmatprep.subr.bf16.mxu0 0
    %777 = vmatpush1.bf16.msra.mxu0 0
    %778 = vmatprep.subr.bf16.mxu0 0
    %779 = vmatpush1.bf16.msra.mxu0 %v759
    %780 = vmatprep.subr.bf16.mxu0 0
    %781 = vmatpush2.bf16.msra.mxu0 0
    %782 = vmatprep.subr.bf16.mxu0 0
    %783 = vmatpush2.bf16.msra.mxu0 0
    %784 = vmatprep.subr.bf16.mxu0 0
    %785 = vmatpush2.bf16.msra.mxu0 0
    %786 = vmatprep.subr.bf16.mxu0 0
    %787 = vmatpush2.bf16.msra.mxu0 0
    %788 = vmatprep.subr.bf16.mxu0 0
    %789 = vmatpush2.bf16.msra.mxu0 0
    %790 = vmatprep.subr.bf16.mxu0 0
    %791 = vmatpush2.bf16.msra.mxu0 0
    %792 = vmatprep.subr.bf16.mxu0 0
    %793 = vmatpush2.bf16.msra.mxu0 0
    %794 = vmatprep.subr.bf16.mxu0 0
    %795 = vmatpush2.bf16.msra.mxu0 0
    %796 = vmatprep.mubr.bf16.mxu0 0
    %797 = vmatmul.mubr.bf16.gmra.mxu0 %v762
    %v798 = vpop.f32.mrf.mxu0
    %v799 = vadd.f32 0.0, %v798
    %v800 = vpop.f32.mrf.mxu0
    %v801 = vpop.f32.mrf.mxu0
    %v802 = vadd.f32 0.0, %v801
    %v803 = vpop.f32.mrf.mxu0
    %804 = vdwg.mxu0
    %807 = vrot.lane.b32.xlu0 %v799, 24
    %v808 = vpop.permute.xlu0 %807
    %809 = vrot.lane.b32.xlu0 %v802, 24
    %v810 = vpop.permute.xlu0 %809
    %vm813 = vcmask 261312
    %814 = vst.msk [vmem:[#allocation2] sm:$0xff] %vm813, %v808
    %815 = vst.msk [vmem:[#allocation2 + $0x8] sm:$0xff] %vm813, %v810
    %816 = vrot.lane.b32.xlu0 %v297, 96
    %v817 = vpop.permute.xlu0 %816
    %v819 = vsel %vm299, %v817, 0
    %v822 = vsel %vm303, %v197, 0
    %824 = vmatprep.subr.bf16.mxu0 0
    %825 = vmatpush1.bf16.msra.mxu0 0
    %826 = vmatprep.subr.bf16.mxu0 0
    %827 = vmatpush1.bf16.msra.mxu0 0
    %828 = vmatprep.subr.bf16.mxu0 0
    %829 = vmatpush1.bf16.msra.mxu0 0
    %830 = vmatprep.subr.bf16.mxu0 0
    %831 = vmatpush1.bf16.msra.mxu0 0
    %832 = vmatprep.subr.bf16.mxu0 0
    %833 = vmatpush1.bf16.msra.mxu0 0
    %834 = vmatprep.subr.bf16.mxu0 0
    %835 = vmatpush1.bf16.msra.mxu0 0
    %836 = vmatprep.subr.bf16.mxu0 0
    %837 = vmatpush1.bf16.msra.mxu0 0
    %838 = vmatprep.subr.bf16.mxu0 0
    %839 = vmatpush1.bf16.msra.mxu0 %v822
    %840 = vmatprep.subr.bf16.mxu0 0
    %841 = vmatpush2.bf16.msra.mxu0 0
    %842 = vmatprep.subr.bf16.mxu0 0
    %843 = vmatpush2.bf16.msra.mxu0 0
    %844 = vmatprep.subr.bf16.mxu0 0
    %845 = vmatpush2.bf16.msra.mxu0 0
    %846 = vmatprep.subr.bf16.mxu0 0
    %847 = vmatpush2.bf16.msra.mxu0 0
    %848 = vmatprep.subr.bf16.mxu0 0
    %849 = vmatpush2.bf16.msra.mxu0 0
    %850 = vmatprep.subr.bf16.mxu0 0
    %851 = vmatpush2.bf16.msra.mxu0 0
    %852 = vmatprep.subr.bf16.mxu0 0
    %853 = vmatpush2.bf16.msra.mxu0 0
    %854 = vmatprep.subr.bf16.mxu0 0
    %855 = vmatpush2.bf16.msra.mxu0 0
    %856 = vmatprep.mubr.bf16.mxu0 0
    %857 = vmatmul.mubr.bf16.gmra.mxu0 %v819
    %v858 = vpop.f32.mrf.mxu0
    %v859 = vadd.f32 0.0, %v858
    %v860 = vpop.f32.mrf.mxu0
    %v861 = vpop.f32.mrf.mxu0
    %v862 = vadd.f32 0.0, %v861
    %v863 = vpop.f32.mrf.mxu0
    %864 = vdwg.mxu0
    %v865 = vsel %vm348, %v859, -inf
    %866 = vmax.xlane.f32.xlu0 %v865
    %v867 = vpop.xlane.xlu0 %866
    %v868 = vsel %vm348, %v862, -inf
    %869 = vmax.xlane.f32.xlu0 %v868
    %v870 = vpop.xlane.xlu0 %869
    %v871 = vsub.f32 %v859, %v867
    %v872 = vsub.f32 %v862, %v870
    %v873 = vmul.f32 %v871, 1.442695
    %v874 = vpow.pop %v873
    %v875 = vmul.f32 %v872, 1.442695
    %v876 = vpow.pop %v875
    %v877 = vsel %vm348, %v874, 0.0
    %878 = vadd.xlane.f32.xlu0 %v877
    %v879 = vpop.xlane.xlu0 %878
    %v880 = vsel %vm348, %v876, 0.0
    %881 = vadd.xlane.f32.xlu0 %v880
    %v882 = vpop.xlane.xlu0 %881
    %v883 = vrcp.pop %v879
    %v884 = vrcp.pop %v882
    %v885 = vmul.f32 %v874, %v883
    %v886 = vmul.f32 %v876, %v884
    %v887 = vpack.c.bf16 %v886, %v885
    %888 = vrot.lane.b32.xlu0 %v297, 40
    %v889 = vpop.permute.xlu0 %888
    %v892 = vsel %vm348, %v887, 0
    %894 = vmatprep.subr.bf16.mxu0 0
    %895 = vmatpush1.bf16.msra.mxu0 0
    %896 = vmatprep.subr.bf16.mxu0 0
    %897 = vmatpush1.bf16.msra.mxu0 0
    %898 = vmatprep.subr.bf16.mxu0 0
    %899 = vmatpush1.bf16.msra.mxu0 0
    %900 = vmatprep.subr.bf16.mxu0 0
    %901 = vmatpush1.bf16.msra.mxu0 0
    %902 = vmatprep.subr.bf16.mxu0 0
    %903 = vmatpush1.bf16.msra.mxu0 0
    %904 = vmatprep.subr.bf16.mxu0 0
    %905 = vmatpush1.bf16.msra.mxu0 0
    %906 = vmatprep.subr.bf16.mxu0 0
    %907 = vmatpush1.bf16.msra.mxu0 0
    %908 = vmatprep.subr.bf16.mxu0 0
    %909 = vmatpush1.bf16.msra.mxu0 %v889
    %910 = vmatprep.subr.bf16.mxu0 0
    %911 = vmatpush2.bf16.msra.mxu0 0
    %912 = vmatprep.subr.bf16.mxu0 0
    %913 = vmatpush2.bf16.msra.mxu0 0
    %914 = vmatprep.subr.bf16.mxu0 0
    %915 = vmatpush2.bf16.msra.mxu0 0
    %916 = vmatprep.subr.bf16.mxu0 0
    %917 = vmatpush2.bf16.msra.mxu0 0
    %918 = vmatprep.subr.bf16.mxu0 0
    %919 = vmatpush2.bf16.msra.mxu0 0
    %920 = vmatprep.subr.bf16.mxu0 0
    %921 = vmatpush2.bf16.msra.mxu0 0
    %922 = vmatprep.subr.bf16.mxu0 0
    %923 = vmatpush2.bf16.msra.mxu0 0
    %924 = vmatprep.subr.bf16.mxu0 0
    %925 = vmatpush2.bf16.msra.mxu0 0
    %926 = vmatprep.mubr.bf16.mxu0 0
    %927 = vmatmul.mubr.bf16.gmra.mxu0 %v892
    %v928 = vpop.f32.mrf.mxu0
    %v929 = vadd.f32 0.0, %v928
    %v930 = vpop.f32.mrf.mxu0
    %v931 = vpop.f32.mrf.mxu0
    %v932 = vadd.f32 0.0, %v931
    %v933 = vpop.f32.mrf.mxu0
    %934 = vdwg.mxu0
    %937 = vrot.lane.b32.xlu0 %v929, 32
    %v938 = vpop.permute.xlu0 %937
    %939 = vrot.lane.b32.xlu0 %v932, 32
    %v940 = vpop.permute.xlu0 %939
    %vm943 = vcmask 326912
    %944 = vst.msk [vmem:[#allocation2] sm:$0xff] %vm943, %v938
    %945 = vst.msk [vmem:[#allocation2 + $0x8] sm:$0xff] %vm943, %v940
    %946 = vrot.lane.b32.xlu0 %v297, 88
    %v947 = vpop.permute.xlu0 %946
    %v949 = vrot.slane %v197, 4
    %v951 = vsel %vm299, %v947, 0
    %v954 = vsel %vm303, %v949, 0
    %956 = vmatprep.subr.bf16.mxu0 0
    %957 = vmatpush1.bf16.msra.mxu0 0
    %958 = vmatprep.subr.bf16.mxu0 0
    %959 = vmatpush1.bf16.msra.mxu0 0
    %960 = vmatprep.subr.bf16.mxu0 0
    %961 = vmatpush1.bf16.msra.mxu0 0
    %962 = vmatprep.subr.bf16.mxu0 0
    %963 = vmatpush1.bf16.msra.mxu0 0
    %964 = vmatprep.subr.bf16.mxu0 0
    %965 = vmatpush1.bf16.msra.mxu0 0
    %966 = vmatprep.subr.bf16.mxu0 0
    %967 = vmatpush1.bf16.msra.mxu0 0
    %968 = vmatprep.subr.bf16.mxu0 0
    %969 = vmatpush1.bf16.msra.mxu0 0
    %970 = vmatprep.subr.bf16.mxu0 0
    %971 = vmatpush1.bf16.msra.mxu0 %v954
    %972 = vmatprep.subr.bf16.mxu0 0
    %973 = vmatpush2.bf16.msra.mxu0 0
    %974 = vmatprep.subr.bf16.mxu0 0
    %975 = vmatpush2.bf16.msra.mxu0 0
    %976 = vmatprep.subr.bf16.mxu0 0
    %977 = vmatpush2.bf16.msra.mxu0 0
    %978 = vmatprep.subr.bf16.mxu0 0
    %979 = vmatpush2.bf16.msra.mxu0 0
    %980 = vmatprep.subr.bf16.mxu0 0
    %981 = vmatpush2.bf16.msra.mxu0 0
    %982 = vmatprep.subr.bf16.mxu0 0
    %983 = vmatpush2.bf16.msra.mxu0 0
    %984 = vmatprep.subr.bf16.mxu0 0
    %985 = vmatpush2.bf16.msra.mxu0 0
    %986 = vmatprep.subr.bf16.mxu0 0
    %987 = vmatpush2.bf16.msra.mxu0 0
    %988 = vmatprep.mubr.bf16.mxu0 0
    %989 = vmatmul.mubr.bf16.gmra.mxu0 %v951
    %v990 = vpop.f32.mrf.mxu0
    %v991 = vadd.f32 0.0, %v990
    %v992 = vpop.f32.mrf.mxu0
    %v993 = vpop.f32.mrf.mxu0
    %v994 = vadd.f32 0.0, %v993
    %v995 = vpop.f32.mrf.mxu0
    %996 = vdwg.mxu0
    %v997 = vsel %vm348, %v991, -inf
    %998 = vmax.xlane.f32.xlu0 %v997
    %v999 = vpop.xlane.xlu0 %998
    %v1000 = vsel %vm348, %v994, -inf
    %1001 = vmax.xlane.f32.xlu0 %v1000
    %v1002 = vpop.xlane.xlu0 %1001
    %v1003 = vsub.f32 %v991, %v999
    %v1004 = vsub.f32 %v994, %v1002
    %v1005 = vmul.f32 %v1003, 1.442695
    %v1006 = vpow.pop %v1005
    %v1007 = vmul.f32 %v1004, 1.442695
    %v1008 = vpow.pop %v1007
    %v1009 = vsel %vm348, %v1006, 0.0
    %1010 = vadd.xlane.f32.xlu0 %v1009
    %v1011 = vpop.xlane.xlu0 %1010
    %v1012 = vsel %vm348, %v1008, 0.0
    %1013 = vadd.xlane.f32.xlu0 %v1012
    %v1014 = vpop.xlane.xlu0 %1013
    %v1015 = vrcp.pop %v1011
    %v1016 = vrcp.pop %v1014
    %v1017 = vmul.f32 %v1006, %v1015
    %v1018 = vmul.f32 %v1008, %v1016
    %v1019 = vpack.c.bf16 %v1018, %v1017
    %1020 = vrot.lane.b32.xlu0 %v297, 32
    %v1021 = vpop.permute.xlu0 %1020
    %v1024 = vsel %vm348, %v1019, 0
    %1026 = vmatprep.subr.bf16.mxu0 0
    %1027 = vmatpush1.bf16.msra.mxu0 0
    %1028 = vmatprep.subr.bf16.mxu0 0
    %1029 = vmatpush1.bf16.msra.mxu0 0
    %1030 = vmatprep.subr.bf16.mxu0 0
    %1031 = vmatpush1.bf16.msra.mxu0 0
    %1032 = vmatprep.subr.bf16.mxu0 0
    %1033 = vmatpush1.bf16.msra.mxu0 0
    %1034 = vmatprep.subr.bf16.mxu0 0
    %1035 = vmatpush1.bf16.msra.mxu0 0
    %1036 = vmatprep.subr.bf16.mxu0 0
    %1037 = vmatpush1.bf16.msra.mxu0 0
    %1038 = vmatprep.subr.bf16.mxu0 0
    %1039 = vmatpush1.bf16.msra.mxu0 0
    %1040 = vmatprep.subr.bf16.mxu0 0
    %1041 = vmatpush1.bf16.msra.mxu0 %v1021
    %1042 = vmatprep.subr.bf16.mxu0 0
    %1043 = vmatpush2.bf16.msra.mxu0 0
    %1044 = vmatprep.subr.bf16.mxu0 0
    %1045 = vmatpush2.bf16.msra.mxu0 0
    %1046 = vmatprep.subr.bf16.mxu0 0
    %1047 = vmatpush2.bf16.msra.mxu0 0
    %1048 = vmatprep.subr.bf16.mxu0 0
    %1049 = vmatpush2.bf16.msra.mxu0 0
    %1050 = vmatprep.subr.bf16.mxu0 0
    %1051 = vmatpush2.bf16.msra.mxu0 0
    %1052 = vmatprep.subr.bf16.mxu0 0
    %1053 = vmatpush2.bf16.msra.mxu0 0
    %1054 = vmatprep.subr.bf16.mxu0 0
    %1055 = vmatpush2.bf16.msra.mxu0 0
    %1056 = vmatprep.subr.bf16.mxu0 0
    %1057 = vmatpush2.bf16.msra.mxu0 0
    %1058 = vmatprep.mubr.bf16.mxu0 0
    %1059 = vmatmul.mubr.bf16.gmra.mxu0 %v1024
    %v1060 = vpop.f32.mrf.mxu0
    %v1061 = vadd.f32 0.0, %v1060
    %v1062 = vpop.f32.mrf.mxu0
    %v1063 = vpop.f32.mrf.mxu0
    %v1064 = vadd.f32 0.0, %v1063
    %v1065 = vpop.f32.mrf.mxu0
    %1066 = vdwg.mxu0
    %1069 = vrot.lane.b32.xlu0 %v1061, 40
    %v1070 = vpop.permute.xlu0 %1069
    %1071 = vrot.lane.b32.xlu0 %v1064, 40
    %v1072 = vpop.permute.xlu0 %1071
    %vm1075 = vcmask 392512
    %1076 = vst.msk [vmem:[#allocation2] sm:$0xff] %vm1075, %v1070
    %1077 = vst.msk [vmem:[#allocation2 + $0x8] sm:$0xff] %vm1075, %v1072
    %1078 = vrot.lane.b32.xlu0 %v297, 80
    %v1079 = vpop.permute.xlu0 %1078
    %v1081 = vsel %vm299, %v1079, 0
    %v1084 = vsel %vm303, %v198, 0
    %1086 = vmatprep.subr.bf16.mxu0 0
    %1087 = vmatpush1.bf16.msra.mxu0 0
    %1088 = vmatprep.subr.bf16.mxu0 0
    %1089 = vmatpush1.bf16.msra.mxu0 0
    %1090 = vmatprep.subr.bf16.mxu0 0
    %1091 = vmatpush1.bf16.msra.mxu0 0
    %1092 = vmatprep.subr.bf16.mxu0 0
    %1093 = vmatpush1.bf16.msra.mxu0 0
    %1094 = vmatprep.subr.bf16.mxu0 0
    %1095 = vmatpush1.bf16.msra.mxu0 0
    %1096 = vmatprep.subr.bf16.mxu0 0
    %1097 = vmatpush1.bf16.msra.mxu0 0
    %1098 = vmatprep.subr.bf16.mxu0 0
    %1099 = vmatpush1.bf16.msra.mxu0 0
    %1100 = vmatprep.subr.bf16.mxu0 0
    %1101 = vmatpush1.bf16.msra.mxu0 %v1084
    %1102 = vmatprep.subr.bf16.mxu0 0
    %1103 = vmatpush2.bf16.msra.mxu0 0
    %1104 = vmatprep.subr.bf16.mxu0 0
    %1105 = vmatpush2.bf16.msra.mxu0 0
    %1106 = vmatprep.subr.bf16.mxu0 0
    %1107 = vmatpush2.bf16.msra.mxu0 0
    %1108 = vmatprep.subr.bf16.mxu0 0
    %1109 = vmatpush2.bf16.msra.mxu0 0
    %1110 = vmatprep.subr.bf16.mxu0 0
    %1111 = vmatpush2.bf16.msra.mxu0 0
    %1112 = vmatprep.subr.bf16.mxu0 0
    %1113 = vmatpush2.bf16.msra.mxu0 0
    %1114 = vmatprep.subr.bf16.mxu0 0
    %1115 = vmatpush2.bf16.msra.mxu0 0
    %1116 = vmatprep.subr.bf16.mxu0 0
    %1117 = vmatpush2.bf16.msra.mxu0 0
    %1118 = vmatprep.mubr.bf16.mxu0 0
    %1119 = vmatmul.mubr.bf16.gmra.mxu0 %v1081
    %v1120 = vpop.f32.mrf.mxu0
    %v1121 = vadd.f32 0.0, %v1120
    %v1122 = vpop.f32.mrf.mxu0
    %v1123 = vpop.f32.mrf.mxu0
    %v1124 = vadd.f32 0.0, %v1123
    %v1125 = vpop.f32.mrf.mxu0
    %1126 = vdwg.mxu0
    %v1127 = vsel %vm348, %v1121, -inf
    %1128 = vmax.xlane.f32.xlu0 %v1127
    %v1129 = vpop.xlane.xlu0 %1128
    %v1130 = vsel %vm348, %v1124, -inf
    %1131 = vmax.xlane.f32.xlu0 %v1130
    %v1132 = vpop.xlane.xlu0 %1131
    %v1133 = vsub.f32 %v1121, %v1129
    %v1134 = vsub.f32 %v1124, %v1132
    %v1135 = vmul.f32 %v1133, 1.442695
    %v1136 = vpow.pop %v1135
    %v1137 = vmul.f32 %v1134, 1.442695
    %v1138 = vpow.pop %v1137
    %v1139 = vsel %vm348, %v1136, 0.0
    %1140 = vadd.xlane.f32.xlu0 %v1139
    %v1141 = vpop.xlane.xlu0 %1140
    %v1142 = vsel %vm348, %v1138, 0.0
    %1143 = vadd.xlane.f32.xlu0 %v1142
    %v1144 = vpop.xlane.xlu0 %1143
    %v1145 = vrcp.pop %v1141
    %v1146 = vrcp.pop %v1144
    %v1147 = vmul.f32 %v1136, %v1145
    %v1148 = vmul.f32 %v1138, %v1146
    %v1149 = vpack.c.bf16 %v1148, %v1147
    %1150 = vrot.lane.b32.xlu0 %v297, 24
    %v1151 = vpop.permute.xlu0 %1150
    %v1154 = vsel %vm348, %v1149, 0
    %1156 = vmatprep.subr.bf16.mxu0 0
    %1157 = vmatpush1.bf16.msra.mxu0 0
    %1158 = vmatprep.subr.bf16.mxu0 0
    %1159 = vmatpush1.bf16.msra.mxu0 0
    %1160 = vmatprep.subr.bf16.mxu0 0
    %1161 = vmatpush1.bf16.msra.mxu0 0
    %1162 = vmatprep.subr.bf16.mxu0 0
    %1163 = vmatpush1.bf16.msra.mxu0 0
    %1164 = vmatprep.subr.bf16.mxu0 0
    %1165 = vmatpush1.bf16.msra.mxu0 0
    %1166 = vmatprep.subr.bf16.mxu0 0
    %1167 = vmatpush1.bf16.msra.mxu0 0
    %1168 = vmatprep.subr.bf16.mxu0 0
    %1169 = vmatpush1.bf16.msra.mxu0 0
    %1170 = vmatprep.subr.bf16.mxu0 0
    %1171 = vmatpush1.bf16.msra.mxu0 %v1151
    %1172 = vmatprep.subr.bf16.mxu0 0
    %1173 = vmatpush2.bf16.msra.mxu0 0
    %1174 = vmatprep.subr.bf16.mxu0 0
    %1175 = vmatpush2.bf16.msra.mxu0 0
    %1176 = vmatprep.subr.bf16.mxu0 0
    %1177 = vmatpush2.bf16.msra.mxu0 0
    %1178 = vmatprep.subr.bf16.mxu0 0
    %1179 = vmatpush2.bf16.msra.mxu0 0
    %1180 = vmatprep.subr.bf16.mxu0 0
    %1181 = vmatpush2.bf16.msra.mxu0 0
    %1182 = vmatprep.subr.bf16.mxu0 0
    %1183 = vmatpush2.bf16.msra.mxu0 0
    %1184 = vmatprep.subr.bf16.mxu0 0
    %1185 = vmatpush2.bf16.msra.mxu0 0
    %1186 = vmatprep.subr.bf16.mxu0 0
    %1187 = vmatpush2.bf16.msra.mxu0 0
    %1188 = vmatprep.mubr.bf16.mxu0 0
    %1189 = vmatmul.mubr.bf16.gmra.mxu0 %v1154
    %v1190 = vpop.f32.mrf.mxu0
    %v1191 = vadd.f32 0.0, %v1190
    %v1192 = vpop.f32.mrf.mxu0
    %v1193 = vpop.f32.mrf.mxu0
    %v1194 = vadd.f32 0.0, %v1193
    %v1195 = vpop.f32.mrf.mxu0
    %1196 = vdwg.mxu0
    %1199 = vrot.lane.b32.xlu0 %v1191, 48
    %v1200 = vpop.permute.xlu0 %1199
    %1201 = vrot.lane.b32.xlu0 %v1194, 48
    %v1202 = vpop.permute.xlu0 %1201
    %vm1205 = vcmask 458112
    %1206 = vst.msk [vmem:[#allocation2] sm:$0xff] %vm1205, %v1200
    %1207 = vst.msk [vmem:[#allocation2 + $0x8] sm:$0xff] %vm1205, %v1202
    %1208 = vrot.lane.b32.xlu0 %v195, 112
    %v1209 = vpop.permute.xlu0 %1208
    %v1211 = vsel %vm299, %v298, 0
    %v1214 = vsel %vm303, %v1209, 0
    %1216 = vmatprep.subr.bf16.mxu0 0
    %1217 = vmatpush1.bf16.msra.mxu0 0
    %1218 = vmatprep.subr.bf16.mxu0 0
    %1219 = vmatpush1.bf16.msra.mxu0 0
    %1220 = vmatprep.subr.bf16.mxu0 0
    %1221 = vmatpush1.bf16.msra.mxu0 0
    %1222 = vmatprep.subr.bf16.mxu0 0
    %1223 = vmatpush1.bf16.msra.mxu0 0
    %1224 = vmatprep.subr.bf16.mxu0 0
    %1225 = vmatpush1.bf16.msra.mxu0 0
    %1226 = vmatprep.subr.bf16.mxu0 0
    %1227 = vmatpush1.bf16.msra.mxu0 0
    %1228 = vmatprep.subr.bf16.mxu0 0
    %1229 = vmatpush1.bf16.msra.mxu0 0
    %1230 = vmatprep.subr.bf16.mxu0 0
    %1231 = vmatpush1.bf16.msra.mxu0 %v1214
    %1232 = vmatprep.subr.bf16.mxu0 0
    %1233 = vmatpush2.bf16.msra.mxu0 0
    %1234 = vmatprep.subr.bf16.mxu0 0
    %1235 = vmatpush2.bf16.msra.mxu0 0
    %1236 = vmatprep.subr.bf16.mxu0 0
    %1237 = vmatpush2.bf16.msra.mxu0 0
    %1238 = vmatprep.subr.bf16.mxu0 0
    %1239 = vmatpush2.bf16.msra.mxu0 0
    %1240 = vmatprep.subr.bf16.mxu0 0
    %1241 = vmatpush2.bf16.msra.mxu0 0
    %1242 = vmatprep.subr.bf16.mxu0 0
    %1243 = vmatpush2.bf16.msra.mxu0 0
    %1244 = vmatprep.subr.bf16.mxu0 0
    %1245 = vmatpush2.bf16.msra.mxu0 0
    %1246 = vmatprep.subr.bf16.mxu0 0
    %1247 = vmatpush2.bf16.msra.mxu0 0
    %1248 = vmatprep.mubr.bf16.mxu0 0
    %1249 = vmatmul.mubr.bf16.gmra.mxu0 %v1211
    %v1250 = vpop.f32.mrf.mxu0
    %v1251 = vadd.f32 0.0, %v1250
    %v1252 = vpop.f32.mrf.mxu0
    %v1253 = vpop.f32.mrf.mxu0
    %v1254 = vadd.f32 0.0, %v1253
    %v1255 = vpop.f32.mrf.mxu0
    %1256 = vdwg.mxu0
    %v1257 = vsel %vm348, %v1251, -inf
    %1258 = vmax.xlane.f32.xlu0 %v1257
    %v1259 = vpop.xlane.xlu0 %1258
    %v1260 = vsel %vm348, %v1254, -inf
    %1261 = vmax.xlane.f32.xlu0 %v1260
    %v1262 = vpop.xlane.xlu0 %1261
    %v1263 = vsub.f32 %v1251, %v1259
    %v1264 = vsub.f32 %v1254, %v1262
    %v1265 = vmul.f32 %v1263, 1.442695
    %v1266 = vpow.pop %v1265
    %v1267 = vmul.f32 %v1264, 1.442695
    %v1268 = vpow.pop %v1267
    %v1269 = vsel %vm348, %v1266, 0.0
    %1270 = vadd.xlane.f32.xlu0 %v1269
    %v1271 = vpop.xlane.xlu0 %1270
    %v1272 = vsel %vm348, %v1268, 0.0
    %1273 = vadd.xlane.f32.xlu0 %v1272
    %v1274 = vpop.xlane.xlu0 %1273
    %v1275 = vrcp.pop %v1271
    %v1276 = vrcp.pop %v1274
    %v1277 = vmul.f32 %v1266, %v1275
    %v1278 = vmul.f32 %v1268, %v1276
    %v1279 = vpack.c.bf16 %v1278, %v1277
    %1281 = vrot.lane.b32.xlu0 %v298, 72
    %v1282 = vpop.permute.xlu0 %1281
    %v1285 = vsel %vm348, %v1279, 0
    %1287 = vmatprep.subr.bf16.mxu0 0
    %1288 = vmatpush1.bf16.msra.mxu0 0
    %1289 = vmatprep.subr.bf16.mxu0 0
    %1290 = vmatpush1.bf16.msra.mxu0 0
    %1291 = vmatprep.subr.bf16.mxu0 0
    %1292 = vmatpush1.bf16.msra.mxu0 0
    %1293 = vmatprep.subr.bf16.mxu0 0
    %1294 = vmatpush1.bf16.msra.mxu0 0
    %1295 = vmatprep.subr.bf16.mxu0 0
    %1296 = vmatpush1.bf16.msra.mxu0 0
    %1297 = vmatprep.subr.bf16.mxu0 0
    %1298 = vmatpush1.bf16.msra.mxu0 0
    %1299 = vmatprep.subr.bf16.mxu0 0
    %1300 = vmatpush1.bf16.msra.mxu0 0
    %1301 = vmatprep.subr.bf16.mxu0 0
    %1302 = vmatpush1.bf16.msra.mxu0 %v1282
    %1303 = vmatprep.subr.bf16.mxu0 0
    %1304 = vmatpush2.bf16.msra.mxu0 0
    %1305 = vmatprep.subr.bf16.mxu0 0
    %1306 = vmatpush2.bf16.msra.mxu0 0
    %1307 = vmatprep.subr.bf16.mxu0 0
    %1308 = vmatpush2.bf16.msra.mxu0 0
    %1309 = vmatprep.subr.bf16.mxu0 0
    %1310 = vmatpush2.bf16.msra.mxu0 0
    %1311 = vmatprep.subr.bf16.mxu0 0
    %1312 = vmatpush2.bf16.msra.mxu0 0
    %1313 = vmatprep.subr.bf16.mxu0 0
    %1314 = vmatpush2.bf16.msra.mxu0 0
    %1315 = vmatprep.subr.bf16.mxu0 0
    %1316 = vmatpush2.bf16.msra.mxu0 0
    %1317 = vmatprep.subr.bf16.mxu0 0
    %1318 = vmatpush2.bf16.msra.mxu0 0
    %1319 = vmatprep.mubr.bf16.mxu0 0
    %1320 = vmatmul.mubr.bf16.gmra.mxu0 %v1285
    %v1321 = vpop.f32.mrf.mxu0
    %v1322 = vadd.f32 0.0, %v1321
    %v1323 = vpop.f32.mrf.mxu0
    %v1324 = vpop.f32.mrf.mxu0
    %v1325 = vadd.f32 0.0, %v1324
    %v1326 = vpop.f32.mrf.mxu0
    %1327 = vdwg.mxu0
    %1328 = vst.msk [vmem:[#allocation2 + $0x10] sm:$0xff] %vm299, %v1322
    %1329 = vst.msk [vmem:[#allocation2 + $0x18] sm:$0xff] %vm299, %v1325
    %1330 = vrot.lane.b32.xlu0 %v298, 120
    %v1331 = vpop.permute.xlu0 %1330
    %1332 = vrot.lane.b32.xlu0 %v425, 112
    %v1333 = vpop.permute.xlu0 %1332
    %v1335 = vsel %vm299, %v1331, 0
    %v1338 = vsel %vm303, %v1333, 0
    %1340 = vmatprep.subr.bf16.mxu0 0
    %1341 = vmatpush1.bf16.msra.mxu0 0
    %1342 = vmatprep.subr.bf16.mxu0 0
    %1343 = vmatpush1.bf16.msra.mxu0 0
    %1344 = vmatprep.subr.bf16.mxu0 0
    %1345 = vmatpush1.bf16.msra.mxu0 0
    %1346 = vmatprep.subr.bf16.mxu0 0
    %1347 = vmatpush1.bf16.msra.mxu0 0
    %1348 = vmatprep.subr.bf16.mxu0 0
    %1349 = vmatpush1.bf16.msra.mxu0 0
    %1350 = vmatprep.subr.bf16.mxu0 0
    %1351 = vmatpush1.bf16.msra.mxu0 0
    %1352 = vmatprep.subr.bf16.mxu0 0
    %1353 = vmatpush1.bf16.msra.mxu0 0
    %1354 = vmatprep.subr.bf16.mxu0 0
    %1355 = vmatpush1.bf16.msra.mxu0 %v1338
    %1356 = vmatprep.subr.bf16.mxu0 0
    %1357 = vmatpush2.bf16.msra.mxu0 0
    %1358 = vmatprep.subr.bf16.mxu0 0
    %1359 = vmatpush2.bf16.msra.mxu0 0
    %1360 = vmatprep.subr.bf16.mxu0 0
    %1361 = vmatpush2.bf16.msra.mxu0 0
    %1362 = vmatprep.subr.bf16.mxu0 0
    %1363 = vmatpush2.bf16.msra.mxu0 0
    %1364 = vmatprep.subr.bf16.mxu0 0
    %1365 = vmatpush2.bf16.msra.mxu0 0
    %1366 = vmatprep.subr.bf16.mxu0 0
    %1367 = vmatpush2.bf16.msra.mxu0 0
    %1368 = vmatprep.subr.bf16.mxu0 0
    %1369 = vmatpush2.bf16.msra.mxu0 0
    %1370 = vmatprep.subr.bf16.mxu0 0
    %1371 = vmatpush2.bf16.msra.mxu0 0
    %1372 = vmatprep.mubr.bf16.mxu0 0
    %1373 = vmatmul.mubr.bf16.gmra.mxu0 %v1335
    %v1374 = vpop.f32.mrf.mxu0
    %v1375 = vadd.f32 0.0, %v1374
    %v1376 = vpop.f32.mrf.mxu0
    %v1377 = vpop.f32.mrf.mxu0
    %v1378 = vadd.f32 0.0, %v1377
    %v1379 = vpop.f32.mrf.mxu0
    %1380 = vdwg.mxu0
    %v1381 = vsel %vm348, %v1375, -inf
    %1382 = vmax.xlane.f32.xlu0 %v1381
    %v1383 = vpop.xlane.xlu0 %1382
    %v1384 = vsel %vm348, %v1378, -inf
    %1385 = vmax.xlane.f32.xlu0 %v1384
    %v1386 = vpop.xlane.xlu0 %1385
    %v1387 = vsub.f32 %v1375, %v1383
    %v1388 = vsub.f32 %v1378, %v1386
    %v1389 = vmul.f32 %v1387, 1.442695
    %v1390 = vpow.pop %v1389
    %v1391 = vmul.f32 %v1388, 1.442695
    %v1392 = vpow.pop %v1391
    %v1393 = vsel %vm348, %v1390, 0.0
    %1394 = vadd.xlane.f32.xlu0 %v1393
    %v1395 = vpop.xlane.xlu0 %1394
    %v1396 = vsel %vm348, %v1392, 0.0
    %1397 = vadd.xlane.f32.xlu0 %v1396
    %v1398 = vpop.xlane.xlu0 %1397
    %v1399 = vrcp.pop %v1395
    %v1400 = vrcp.pop %v1398
    %v1401 = vmul.f32 %v1390, %v1399
    %v1402 = vmul.f32 %v1392, %v1400
    %v1403 = vpack.c.bf16 %v1402, %v1401
    %1404 = vrot.lane.b32.xlu0 %v298, 64
    %v1405 = vpop.permute.xlu0 %1404
    %v1408 = vsel %vm348, %v1403, 0
    %1410 = vmatprep.subr.bf16.mxu0 0
    %1411 = vmatpush1.bf16.msra.mxu0 0
    %1412 = vmatprep.subr.bf16.mxu0 0
    %1413 = vmatpush1.bf16.msra.mxu0 0
    %1414 = vmatprep.subr.bf16.mxu0 0
    %1415 = vmatpush1.bf16.msra.mxu0 0
    %1416 = vmatprep.subr.bf16.mxu0 0
    %1417 = vmatpush1.bf16.msra.mxu0 0
    %1418 = vmatprep.subr.bf16.mxu0 0
    %1419 = vmatpush1.bf16.msra.mxu0 0
    %1420 = vmatprep.subr.bf16.mxu0 0
    %1421 = vmatpush1.bf16.msra.mxu0 0
    %1422 = vmatprep.subr.bf16.mxu0 0
    %1423 = vmatpush1.bf16.msra.mxu0 0
    %1424 = vmatprep.subr.bf16.mxu0 0
    %1425 = vmatpush1.bf16.msra.mxu0 %v1405
    %1426 = vmatprep.subr.bf16.mxu0 0
    %1427 = vmatpush2.bf16.msra.mxu0 0
    %1428 = vmatprep.subr.bf16.mxu0 0
    %1429 = vmatpush2.bf16.msra.mxu0 0
    %1430 = vmatprep.subr.bf16.mxu0 0
    %1431 = vmatpush2.bf16.msra.mxu0 0
    %1432 = vmatprep.subr.bf16.mxu0 0
    %1433 = vmatpush2.bf16.msra.mxu0 0
    %1434 = vmatprep.subr.bf16.mxu0 0
    %1435 = vmatpush2.bf16.msra.mxu0 0
    %1436 = vmatprep.subr.bf16.mxu0 0
    %1437 = vmatpush2.bf16.msra.mxu0 0
    %1438 = vmatprep.subr.bf16.mxu0 0
    %1439 = vmatpush2.bf16.msra.mxu0 0
    %1440 = vmatprep.subr.bf16.mxu0 0
    %1441 = vmatpush2.bf16.msra.mxu0 0
    %1442 = vmatprep.mubr.bf16.mxu0 0
    %1443 = vmatmul.mubr.bf16.gmra.mxu0 %v1408
    %v1444 = vpop.f32.mrf.mxu0
    %v1445 = vadd.f32 0.0, %v1444
    %v1446 = vpop.f32.mrf.mxu0
    %v1447 = vpop.f32.mrf.mxu0
    %v1448 = vadd.f32 0.0, %v1447
    %v1449 = vpop.f32.mrf.mxu0
    %1450 = vdwg.mxu0
    %1453 = vrot.lane.b32.xlu0 %v1445, 8
    %v1454 = vpop.permute.xlu0 %1453
    %1455 = vrot.lane.b32.xlu0 %v1448, 8
    %v1456 = vpop.permute.xlu0 %1455
    %1459 = vst.msk [vmem:[#allocation2 + $0x10] sm:$0xff] %vm551, %v1454
    %1460 = vst.msk [vmem:[#allocation2 + $0x18] sm:$0xff] %vm551, %v1456
    %1461 = vrot.lane.b32.xlu0 %v298, 112
    %v1462 = vpop.permute.xlu0 %1461
    %1463 = vrot.lane.b32.xlu0 %v196, 112
    %v1464 = vpop.permute.xlu0 %1463
    %v1466 = vsel %vm299, %v1462, 0
    %v1469 = vsel %vm303, %v1464, 0
    %1471 = vmatprep.subr.bf16.mxu0 0
    %1472 = vmatpush1.bf16.msra.mxu0 0
    %1473 = vmatprep.subr.bf16.mxu0 0
    %1474 = vmatpush1.bf16.msra.mxu0 0
    %1475 = vmatprep.subr.bf16.mxu0 0
    %1476 = vmatpush1.bf16.msra.mxu0 0
    %1477 = vmatprep.subr.bf16.mxu0 0
    %1478 = vmatpush1.bf16.msra.mxu0 0
    %1479 = vmatprep.subr.bf16.mxu0 0
    %1480 = vmatpush1.bf16.msra.mxu0 0
    %1481 = vmatprep.subr.bf16.mxu0 0
    %1482 = vmatpush1.bf16.msra.mxu0 0
    %1483 = vmatprep.subr.bf16.mxu0 0
    %1484 = vmatpush1.bf16.msra.mxu0 0
    %1485 = vmatprep.subr.bf16.mxu0 0
    %1486 = vmatpush1.bf16.msra.mxu0 %v1469
    %1487 = vmatprep.subr.bf16.mxu0 0
    %1488 = vmatpush2.bf16.msra.mxu0 0
    %1489 = vmatprep.subr.bf16.mxu0 0
    %1490 = vmatpush2.bf16.msra.mxu0 0
    %1491 = vmatprep.subr.bf16.mxu0 0
    %1492 = vmatpush2.bf16.msra.mxu0 0
    %1493 = vmatprep.subr.bf16.mxu0 0
    %1494 = vmatpush2.bf16.msra.mxu0 0
    %1495 = vmatprep.subr.bf16.mxu0 0
    %1496 = vmatpush2.bf16.msra.mxu0 0
    %1497 = vmatprep.subr.bf16.mxu0 0
    %1498 = vmatpush2.bf16.msra.mxu0 0
    %1499 = vmatprep.subr.bf16.mxu0 0
    %1500 = vmatpush2.bf16.msra.mxu0 0
    %1501 = vmatprep.subr.bf16.mxu0 0
    %1502 = vmatpush2.bf16.msra.mxu0 0
    %1503 = vmatprep.mubr.bf16.mxu0 0
    %1504 = vmatmul.mubr.bf16.gmra.mxu0 %v1466
    %v1505 = vpop.f32.mrf.mxu0
    %v1506 = vadd.f32 0.0, %v1505
    %v1507 = vpop.f32.mrf.mxu0
    %v1508 = vpop.f32.mrf.mxu0
    %v1509 = vadd.f32 0.0, %v1508
    %v1510 = vpop.f32.mrf.mxu0
    %1511 = vdwg.mxu0
    %v1512 = vsel %vm348, %v1506, -inf
    %1513 = vmax.xlane.f32.xlu0 %v1512
    %v1514 = vpop.xlane.xlu0 %1513
    %v1515 = vsel %vm348, %v1509, -inf
    %1516 = vmax.xlane.f32.xlu0 %v1515
    %v1517 = vpop.xlane.xlu0 %1516
    %v1518 = vsub.f32 %v1506, %v1514
    %v1519 = vsub.f32 %v1509, %v1517
    %v1520 = vmul.f32 %v1518, 1.442695
    %v1521 = vpow.pop %v1520
    %v1522 = vmul.f32 %v1519, 1.442695
    %v1523 = vpow.pop %v1522
    %v1524 = vsel %vm348, %v1521, 0.0
    %1525 = vadd.xlane.f32.xlu0 %v1524
    %v1526 = vpop.xlane.xlu0 %1525
    %v1527 = vsel %vm348, %v1523, 0.0
    %1528 = vadd.xlane.f32.xlu0 %v1527
    %v1529 = vpop.xlane.xlu0 %1528
    %v1530 = vrcp.pop %v1526
    %v1531 = vrcp.pop %v1529
    %v1532 = vmul.f32 %v1521, %v1530
    %v1533 = vmul.f32 %v1523, %v1531
    %v1534 = vpack.c.bf16 %v1533, %v1532
    %1535 = vrot.lane.b32.xlu0 %v298, 56
    %v1536 = vpop.permute.xlu0 %1535
    %v1539 = vsel %vm348, %v1534, 0
    %1541 = vmatprep.subr.bf16.mxu0 0
    %1542 = vmatpush1.bf16.msra.mxu0 0
    %1543 = vmatprep.subr.bf16.mxu0 0
    %1544 = vmatpush1.bf16.msra.mxu0 0
    %1545 = vmatprep.subr.bf16.mxu0 0
    %1546 = vmatpush1.bf16.msra.mxu0 0
    %1547 = vmatprep.subr.bf16.mxu0 0
    %1548 = vmatpush1.bf16.msra.mxu0 0
    %1549 = vmatprep.subr.bf16.mxu0 0
    %1550 = vmatpush1.bf16.msra.mxu0 0
    %1551 = vmatprep.subr.bf16.mxu0 0
    %1552 = vmatpush1.bf16.msra.mxu0 0
    %1553 = vmatprep.subr.bf16.mxu0 0
    %1554 = vmatpush1.bf16.msra.mxu0 0
    %1555 = vmatprep.subr.bf16.mxu0 0
    %1556 = vmatpush1.bf16.msra.mxu0 %v1536
    %1557 = vmatprep.subr.bf16.mxu0 0
    %1558 = vmatpush2.bf16.msra.mxu0 0
    %1559 = vmatprep.subr.bf16.mxu0 0
    %1560 = vmatpush2.bf16.msra.mxu0 0
    %1561 = vmatprep.subr.bf16.mxu0 0
    %1562 = vmatpush2.bf16.msra.mxu0 0
    %1563 = vmatprep.subr.bf16.mxu0 0
    %1564 = vmatpush2.bf16.msra.mxu0 0
    %1565 = vmatprep.subr.bf16.mxu0 0
    %1566 = vmatpush2.bf16.msra.mxu0 0
    %1567 = vmatprep.subr.bf16.mxu0 0
    %1568 = vmatpush2.bf16.msra.mxu0 0
    %1569 = vmatprep.subr.bf16.mxu0 0
    %1570 = vmatpush2.bf16.msra.mxu0 0
    %1571 = vmatprep.subr.bf16.mxu0 0
    %1572 = vmatpush2.bf16.msra.mxu0 0
    %1573 = vmatprep.mubr.bf16.mxu0 0
    %1574 = vmatmul.mubr.bf16.gmra.mxu0 %v1539
    %v1575 = vpop.f32.mrf.mxu0
    %v1576 = vadd.f32 0.0, %v1575
    %v1577 = vpop.f32.mrf.mxu0
    %v1578 = vpop.f32.mrf.mxu0
    %v1579 = vadd.f32 0.0, %v1578
    %v1580 = vpop.f32.mrf.mxu0
    %1581 = vdwg.mxu0
    %1584 = vrot.lane.b32.xlu0 %v1576, 16
    %v1585 = vpop.permute.xlu0 %1584
    %1586 = vrot.lane.b32.xlu0 %v1579, 16
    %v1587 = vpop.permute.xlu0 %1586
    %1590 = vst.msk [vmem:[#allocation2 + $0x10] sm:$0xff] %vm681, %v1585
    %1591 = vst.msk [vmem:[#allocation2 + $0x18] sm:$0xff] %vm681, %v1587
    %1592 = vrot.lane.b32.xlu0 %v298, 104
    %v1593 = vpop.permute.xlu0 %1592
    %1594 = vrot.lane.b32.xlu0 %v687, 112
    %v1595 = vpop.permute.xlu0 %1594
    %v1597 = vsel %vm299, %v1593, 0
    %v1600 = vsel %vm303, %v1595, 0
    %1602 = vmatprep.subr.bf16.mxu0 0
    %1603 = vmatpush1.bf16.msra.mxu0 0
    %1604 = vmatprep.subr.bf16.mxu0 0
    %1605 = vmatpush1.bf16.msra.mxu0 0
    %1606 = vmatprep.subr.bf16.mxu0 0
    %1607 = vmatpush1.bf16.msra.mxu0 0
    %1608 = vmatprep.subr.bf16.mxu0 0
    %1609 = vmatpush1.bf16.msra.mxu0 0
    %1610 = vmatprep.subr.bf16.mxu0 0
    %1611 = vmatpush1.bf16.msra.mxu0 0
    %1612 = vmatprep.subr.bf16.mxu0 0
    %1613 = vmatpush1.bf16.msra.mxu0 0
    %1614 = vmatprep.subr.bf16.mxu0 0
    %1615 = vmatpush1.bf16.msra.mxu0 0
    %1616 = vmatprep.subr.bf16.mxu0 0
    %1617 = vmatpush1.bf16.msra.mxu0 %v1600
    %1618 = vmatprep.subr.bf16.mxu0 0
    %1619 = vmatpush2.bf16.msra.mxu0 0
    %1620 = vmatprep.subr.bf16.mxu0 0
    %1621 = vmatpush2.bf16.msra.mxu0 0
    %1622 = vmatprep.subr.bf16.mxu0 0
    %1623 = vmatpush2.bf16.msra.mxu0 0
    %1624 = vmatprep.subr.bf16.mxu0 0
    %1625 = vmatpush2.bf16.msra.mxu0 0
    %1626 = vmatprep.subr.bf16.mxu0 0
    %1627 = vmatpush2.bf16.msra.mxu0 0
    %1628 = vmatprep.subr.bf16.mxu0 0
    %1629 = vmatpush2.bf16.msra.mxu0 0
    %1630 = vmatprep.subr.bf16.mxu0 0
    %1631 = vmatpush2.bf16.msra.mxu0 0
    %1632 = vmatprep.subr.bf16.mxu0 0
    %1633 = vmatpush2.bf16.msra.mxu0 0
    %1634 = vmatprep.mubr.bf16.mxu0 0
    %1635 = vmatmul.mubr.bf16.gmra.mxu0 %v1597
    %v1636 = vpop.f32.mrf.mxu0
    %v1637 = vadd.f32 0.0, %v1636
    %v1638 = vpop.f32.mrf.mxu0
    %v1639 = vpop.f32.mrf.mxu0
    %v1640 = vadd.f32 0.0, %v1639
    %v1641 = vpop.f32.mrf.mxu0
    %1642 = vdwg.mxu0
    %v1643 = vsel %vm348, %v1637, -inf
    %1644 = vmax.xlane.f32.xlu0 %v1643
    %v1645 = vpop.xlane.xlu0 %1644
    %v1646 = vsel %vm348, %v1640, -inf
    %1647 = vmax.xlane.f32.xlu0 %v1646
    %v1648 = vpop.xlane.xlu0 %1647
    %v1649 = vsub.f32 %v1637, %v1645
    %v1650 = vsub.f32 %v1640, %v1648
    %v1651 = vmul.f32 %v1649, 1.442695
    %v1652 = vpow.pop %v1651
    %v1653 = vmul.f32 %v1650, 1.442695
    %v1654 = vpow.pop %v1653
    %v1655 = vsel %vm348, %v1652, 0.0
    %1656 = vadd.xlane.f32.xlu0 %v1655
    %v1657 = vpop.xlane.xlu0 %1656
    %v1658 = vsel %vm348, %v1654, 0.0
    %1659 = vadd.xlane.f32.xlu0 %v1658
    %v1660 = vpop.xlane.xlu0 %1659
    %v1661 = vrcp.pop %v1657
    %v1662 = vrcp.pop %v1660
    %v1663 = vmul.f32 %v1652, %v1661
    %v1664 = vmul.f32 %v1654, %v1662
    %v1665 = vpack.c.bf16 %v1664, %v1663
    %1666 = vrot.lane.b32.xlu0 %v298, 48
    %v1667 = vpop.permute.xlu0 %1666
    %v1670 = vsel %vm348, %v1665, 0
    %1672 = vmatprep.subr.bf16.mxu0 0
    %1673 = vmatpush1.bf16.msra.mxu0 0
    %1674 = vmatprep.subr.bf16.mxu0 0
    %1675 = vmatpush1.bf16.msra.mxu0 0
    %1676 = vmatprep.subr.bf16.mxu0 0
    %1677 = vmatpush1.bf16.msra.mxu0 0
    %1678 = vmatprep.subr.bf16.mxu0 0
    %1679 = vmatpush1.bf16.msra.mxu0 0
    %1680 = vmatprep.subr.bf16.mxu0 0
    %1681 = vmatpush1.bf16.msra.mxu0 0
    %1682 = vmatprep.subr.bf16.mxu0 0
    %1683 = vmatpush1.bf16.msra.mxu0 0
    %1684 = vmatprep.subr.bf16.mxu0 0
    %1685 = vmatpush1.bf16.msra.mxu0 0
    %1686 = vmatprep.subr.bf16.mxu0 0
    %1687 = vmatpush1.bf16.msra.mxu0 %v1667
    %1688 = vmatprep.subr.bf16.mxu0 0
    %1689 = vmatpush2.bf16.msra.mxu0 0
    %1690 = vmatprep.subr.bf16.mxu0 0
    %1691 = vmatpush2.bf16.msra.mxu0 0
    %1692 = vmatprep.subr.bf16.mxu0 0
    %1693 = vmatpush2.bf16.msra.mxu0 0
    %1694 = vmatprep.subr.bf16.mxu0 0
    %1695 = vmatpush2.bf16.msra.mxu0 0
    %1696 = vmatprep.subr.bf16.mxu0 0
    %1697 = vmatpush2.bf16.msra.mxu0 0
    %1698 = vmatprep.subr.bf16.mxu0 0
    %1699 = vmatpush2.bf16.msra.mxu0 0
    %1700 = vmatprep.subr.bf16.mxu0 0
    %1701 = vmatpush2.bf16.msra.mxu0 0
    %1702 = vmatprep.subr.bf16.mxu0 0
    %1703 = vmatpush2.bf16.msra.mxu0 0
    %1704 = vmatprep.mubr.bf16.mxu0 0
    %1705 = vmatmul.mubr.bf16.gmra.mxu0 %v1670
    %v1706 = vpop.f32.mrf.mxu0
    %v1707 = vadd.f32 0.0, %v1706
    %v1708 = vpop.f32.mrf.mxu0
    %v1709 = vpop.f32.mrf.mxu0
    %v1710 = vadd.f32 0.0, %v1709
    %v1711 = vpop.f32.mrf.mxu0
    %1712 = vdwg.mxu0
    %1715 = vrot.lane.b32.xlu0 %v1707, 24
    %v1716 = vpop.permute.xlu0 %1715
    %1717 = vrot.lane.b32.xlu0 %v1710, 24
    %v1718 = vpop.permute.xlu0 %1717
    %1721 = vst.msk [vmem:[#allocation2 + $0x10] sm:$0xff] %vm813, %v1716
    %1722 = vst.msk [vmem:[#allocation2 + $0x18] sm:$0xff] %vm813, %v1718
    %1723 = vrot.lane.b32.xlu0 %v298, 96
    %v1724 = vpop.permute.xlu0 %1723
    %1725 = vrot.lane.b32.xlu0 %v197, 112
    %v1726 = vpop.permute.xlu0 %1725
    %v1728 = vsel %vm299, %v1724, 0
    %v1731 = vsel %vm303, %v1726, 0
    %1733 = vmatprep.subr.bf16.mxu0 0
    %1734 = vmatpush1.bf16.msra.mxu0 0
    %1735 = vmatprep.subr.bf16.mxu0 0
    %1736 = vmatpush1.bf16.msra.mxu0 0
    %1737 = vmatprep.subr.bf16.mxu0 0
    %1738 = vmatpush1.bf16.msra.mxu0 0
    %1739 = vmatprep.subr.bf16.mxu0 0
    %1740 = vmatpush1.bf16.msra.mxu0 0
    %1741 = vmatprep.subr.bf16.mxu0 0
    %1742 = vmatpush1.bf16.msra.mxu0 0
    %1743 = vmatprep.subr.bf16.mxu0 0
    %1744 = vmatpush1.bf16.msra.mxu0 0
    %1745 = vmatprep.subr.bf16.mxu0 0
    %1746 = vmatpush1.bf16.msra.mxu0 0
    %1747 = vmatprep.subr.bf16.mxu0 0
    %1748 = vmatpush1.bf16.msra.mxu0 %v1731
    %1749 = vmatprep.subr.bf16.mxu0 0
    %1750 = vmatpush2.bf16.msra.mxu0 0
    %1751 = vmatprep.subr.bf16.mxu0 0
    %1752 = vmatpush2.bf16.msra.mxu0 0
    %1753 = vmatprep.subr.bf16.mxu0 0
    %1754 = vmatpush2.bf16.msra.mxu0 0
    %1755 = vmatprep.subr.bf16.mxu0 0
    %1756 = vmatpush2.bf16.msra.mxu0 0
    %1757 = vmatprep.subr.bf16.mxu0 0
    %1758 = vmatpush2.bf16.msra.mxu0 0
    %1759 = vmatprep.subr.bf16.mxu0 0
    %1760 = vmatpush2.bf16.msra.mxu0 0
    %1761 = vmatprep.subr.bf16.mxu0 0
    %1762 = vmatpush2.bf16.msra.mxu0 0
    %1763 = vmatprep.subr.bf16.mxu0 0
    %1764 = vmatpush2.bf16.msra.mxu0 0
    %1765 = vmatprep.mubr.bf16.mxu0 0
    %1766 = vmatmul.mubr.bf16.gmra.mxu0 %v1728
    %v1767 = vpop.f32.mrf.mxu0
    %v1768 = vadd.f32 0.0, %v1767
    %v1769 = vpop.f32.mrf.mxu0
    %v1770 = vpop.f32.mrf.mxu0
    %v1771 = vadd.f32 0.0, %v1770
    %v1772 = vpop.f32.mrf.mxu0
    %1773 = vdwg.mxu0
    %v1774 = vsel %vm348, %v1768, -inf
    %1775 = vmax.xlane.f32.xlu0 %v1774
    %v1776 = vpop.xlane.xlu0 %1775
    %v1777 = vsel %vm348, %v1771, -inf
    %1778 = vmax.xlane.f32.xlu0 %v1777
    %v1779 = vpop.xlane.xlu0 %1778
    %v1780 = vsub.f32 %v1768, %v1776
    %v1781 = vsub.f32 %v1771, %v1779
    %v1782 = vmul.f32 %v1780, 1.442695
    %v1783 = vpow.pop %v1782
    %v1784 = vmul.f32 %v1781, 1.442695
    %v1785 = vpow.pop %v1784
    %v1786 = vsel %vm348, %v1783, 0.0
    %1787 = vadd.xlane.f32.xlu0 %v1786
    %v1788 = vpop.xlane.xlu0 %1787
    %v1789 = vsel %vm348, %v1785, 0.0
    %1790 = vadd.xlane.f32.xlu0 %v1789
    %v1791 = vpop.xlane.xlu0 %1790
    %v1792 = vrcp.pop %v1788
    %v1793 = vrcp.pop %v1791
    %v1794 = vmul.f32 %v1783, %v1792
    %v1795 = vmul.f32 %v1785, %v1793
    %v1796 = vpack.c.bf16 %v1795, %v1794
    %1797 = vrot.lane.b32.xlu0 %v298, 40
    %v1798 = vpop.permute.xlu0 %1797
    %v1801 = vsel %vm348, %v1796, 0
    %1803 = vmatprep.subr.bf16.mxu0 0
    %1804 = vmatpush1.bf16.msra.mxu0 0
    %1805 = vmatprep.subr.bf16.mxu0 0
    %1806 = vmatpush1.bf16.msra.mxu0 0
    %1807 = vmatprep.subr.bf16.mxu0 0
    %1808 = vmatpush1.bf16.msra.mxu0 0
    %1809 = vmatprep.subr.bf16.mxu0 0
    %1810 = vmatpush1.bf16.msra.mxu0 0
    %1811 = vmatprep.subr.bf16.mxu0 0
    %1812 = vmatpush1.bf16.msra.mxu0 0
    %1813 = vmatprep.subr.bf16.mxu0 0
    %1814 = vmatpush1.bf16.msra.mxu0 0
    %1815 = vmatprep.subr.bf16.mxu0 0
    %1816 = vmatpush1.bf16.msra.mxu0 0
    %1817 = vmatprep.subr.bf16.mxu0 0
    %1818 = vmatpush1.bf16.msra.mxu0 %v1798
    %1819 = vmatprep.subr.bf16.mxu0 0
    %1820 = vmatpush2.bf16.msra.mxu0 0
    %1821 = vmatprep.subr.bf16.mxu0 0
    %1822 = vmatpush2.bf16.msra.mxu0 0
    %1823 = vmatprep.subr.bf16.mxu0 0
    %1824 = vmatpush2.bf16.msra.mxu0 0
    %1825 = vmatprep.subr.bf16.mxu0 0
    %1826 = vmatpush2.bf16.msra.mxu0 0
    %1827 = vmatprep.subr.bf16.mxu0 0
    %1828 = vmatpush2.bf16.msra.mxu0 0
    %1829 = vmatprep.subr.bf16.mxu0 0
    %1830 = vmatpush2.bf16.msra.mxu0 0
    %1831 = vmatprep.subr.bf16.mxu0 0
    %1832 = vmatpush2.bf16.msra.mxu0 0
    %1833 = vmatprep.subr.bf16.mxu0 0
    %1834 = vmatpush2.bf16.msra.mxu0 0
    %1835 = vmatprep.mubr.bf16.mxu0 0
    %1836 = vmatmul.mubr.bf16.gmra.mxu0 %v1801
    %v1837 = vpop.f32.mrf.mxu0
    %v1838 = vadd.f32 0.0, %v1837
    %v1839 = vpop.f32.mrf.mxu0
    %v1840 = vpop.f32.mrf.mxu0
    %v1841 = vadd.f32 0.0, %v1840
    %v1842 = vpop.f32.mrf.mxu0
    %1843 = vdwg.mxu0
    %1846 = vrot.lane.b32.xlu0 %v1838, 32
    %v1847 = vpop.permute.xlu0 %1846
    %1848 = vrot.lane.b32.xlu0 %v1841, 32
    %v1849 = vpop.permute.xlu0 %1848
    %1852 = vst.msk [vmem:[#allocation2 + $0x10] sm:$0xff] %vm943, %v1847
    %1853 = vst.msk [vmem:[#allocation2 + $0x18] sm:$0xff] %vm943, %v1849
    %1854 = vrot.lane.b32.xlu0 %v298, 88
    %v1855 = vpop.permute.xlu0 %1854
    %1856 = vrot.lane.b32.xlu0 %v949, 112
    %v1857 = vpop.permute.xlu0 %1856
    %v1859 = vsel %vm299, %v1855, 0
    %v1862 = vsel %vm303, %v1857, 0
    %1864 = vmatprep.subr.bf16.mxu0 0
    %1865 = vmatpush1.bf16.msra.mxu0 0
    %1866 = vmatprep.subr.bf16.mxu0 0
    %1867 = vmatpush1.bf16.msra.mxu0 0
    %1868 = vmatprep.subr.bf16.mxu0 0
    %1869 = vmatpush1.bf16.msra.mxu0 0
    %1870 = vmatprep.subr.bf16.mxu0 0
    %1871 = vmatpush1.bf16.msra.mxu0 0
    %1872 = vmatprep.subr.bf16.mxu0 0
    %1873 = vmatpush1.bf16.msra.mxu0 0
    %1874 = vmatprep.subr.bf16.mxu0 0
    %1875 = vmatpush1.bf16.msra.mxu0 0
    %1876 = vmatprep.subr.bf16.mxu0 0
    %1877 = vmatpush1.bf16.msra.mxu0 0
    %1878 = vmatprep.subr.bf16.mxu0 0
    %1879 = vmatpush1.bf16.msra.mxu0 %v1862
    %1880 = vmatprep.subr.bf16.mxu0 0
    %1881 = vmatpush2.bf16.msra.mxu0 0
    %1882 = vmatprep.subr.bf16.mxu0 0
    %1883 = vmatpush2.bf16.msra.mxu0 0
    %1884 = vmatprep.subr.bf16.mxu0 0
    %1885 = vmatpush2.bf16.msra.mxu0 0
    %1886 = vmatprep.subr.bf16.mxu0 0
    %1887 = vmatpush2.bf16.msra.mxu0 0
    %1888 = vmatprep.subr.bf16.mxu0 0
    %1889 = vmatpush2.bf16.msra.mxu0 0
    %1890 = vmatprep.subr.bf16.mxu0 0
    %1891 = vmatpush2.bf16.msra.mxu0 0
    %1892 = vmatprep.subr.bf16.mxu0 0
    %1893 = vmatpush2.bf16.msra.mxu0 0
    %1894 = vmatprep.subr.bf16.mxu0 0
    %1895 = vmatpush2.bf16.msra.mxu0 0
    %1896 = vmatprep.mubr.bf16.mxu0 0
    %1897 = vmatmul.mubr.bf16.gmra.mxu0 %v1859
    %v1898 = vpop.f32.mrf.mxu0
    %v1899 = vadd.f32 0.0, %v1898
    %v1900 = vpop.f32.mrf.mxu0
    %v1901 = vpop.f32.mrf.mxu0
    %v1902 = vadd.f32 0.0, %v1901
    %v1903 = vpop.f32.mrf.mxu0
    %1904 = vdwg.mxu0
    %v1905 = vsel %vm348, %v1899, -inf
    %1906 = vmax.xlane.f32.xlu0 %v1905
    %v1907 = vpop.xlane.xlu0 %1906
    %v1908 = vsel %vm348, %v1902, -inf
    %1909 = vmax.xlane.f32.xlu0 %v1908
    %v1910 = vpop.xlane.xlu0 %1909
    %v1911 = vsub.f32 %v1899, %v1907
    %v1912 = vsub.f32 %v1902, %v1910
    %v1913 = vmul.f32 %v1911, 1.442695
    %v1914 = vpow.pop %v1913
    %v1915 = vmul.f32 %v1912, 1.442695
    %v1916 = vpow.pop %v1915
    %v1917 = vsel %vm348, %v1914, 0.0
    %1918 = vadd.xlane.f32.xlu0 %v1917
    %v1919 = vpop.xlane.xlu0 %1918
    %v1920 = vsel %vm348, %v1916, 0.0
    %1921 = vadd.xlane.f32.xlu0 %v1920
    %v1922 = vpop.xlane.xlu0 %1921
    %v1923 = vrcp.pop %v1919
    %v1924 = vrcp.pop %v1922
    %v1925 = vmul.f32 %v1914, %v1923
    %v1926 = vmul.f32 %v1916, %v1924
    %v1927 = vpack.c.bf16 %v1926, %v1925
    %1928 = vrot.lane.b32.xlu0 %v298, 32
    %v1929 = vpop.permute.xlu0 %1928
    %v1932 = vsel %vm348, %v1927, 0
    %1934 = vmatprep.subr.bf16.mxu0 0
    %1935 = vmatpush1.bf16.msra.mxu0 0
    %1936 = vmatprep.subr.bf16.mxu0 0
    %1937 = vmatpush1.bf16.msra.mxu0 0
    %1938 = vmatprep.subr.bf16.mxu0 0
    %1939 = vmatpush1.bf16.msra.mxu0 0
    %1940 = vmatprep.subr.bf16.mxu0 0
    %1941 = vmatpush1.bf16.msra.mxu0 0
    %1942 = vmatprep.subr.bf16.mxu0 0
    %1943 = vmatpush1.bf16.msra.mxu0 0
    %1944 = vmatprep.subr.bf16.mxu0 0
    %1945 = vmatpush1.bf16.msra.mxu0 0
    %1946 = vmatprep.subr.bf16.mxu0 0
    %1947 = vmatpush1.bf16.msra.mxu0 0
    %1948 = vmatprep.subr.bf16.mxu0 0
    %1949 = vmatpush1.bf16.msra.mxu0 %v1929
    %1950 = vmatprep.subr.bf16.mxu0 0
    %1951 = vmatpush2.bf16.msra.mxu0 0
    %1952 = vmatprep.subr.bf16.mxu0 0
    %1953 = vmatpush2.bf16.msra.mxu0 0
    %1954 = vmatprep.subr.bf16.mxu0 0
    %1955 = vmatpush2.bf16.msra.mxu0 0
    %1956 = vmatprep.subr.bf16.mxu0 0
    %1957 = vmatpush2.bf16.msra.mxu0 0
    %1958 = vmatprep.subr.bf16.mxu0 0
    %1959 = vmatpush2.bf16.msra.mxu0 0
    %1960 = vmatprep.subr.bf16.mxu0 0
    %1961 = vmatpush2.bf16.msra.mxu0 0
    %1962 = vmatprep.subr.bf16.mxu0 0
    %1963 = vmatpush2.bf16.msra.mxu0 0
    %1964 = vmatprep.subr.bf16.mxu0 0
    %1965 = vmatpush2.bf16.msra.mxu0 0
    %1966 = vmatprep.mubr.bf16.mxu0 0
    %1967 = vmatmul.mubr.bf16.gmra.mxu0 %v1932
    %v1968 = vpop.f32.mrf.mxu0
    %v1969 = vadd.f32 0.0, %v1968
    %v1970 = vpop.f32.mrf.mxu0
    %v1971 = vpop.f32.mrf.mxu0
    %v1972 = vadd.f32 0.0, %v1971
    %v1973 = vpop.f32.mrf.mxu0
    %1974 = vdwg.mxu0
    %1977 = vrot.lane.b32.xlu0 %v1969, 40
    %v1978 = vpop.permute.xlu0 %1977
    %1979 = vrot.lane.b32.xlu0 %v1972, 40
    %v1980 = vpop.permute.xlu0 %1979
    %1983 = vst.msk [vmem:[#allocation2 + $0x10] sm:$0xff] %vm1075, %v1978
    %1984 = vst.msk [vmem:[#allocation2 + $0x18] sm:$0xff] %vm1075, %v1980
    %1985 = vrot.lane.b32.xlu0 %v298, 80
    %v1986 = vpop.permute.xlu0 %1985
    %1988 = vrot.lane.b32.xlu0 %v198, 112
    %v1989 = vpop.permute.xlu0 %1988
    %v1991 = vsel %vm299, %v1986, 0
    %v1994 = vsel %vm303, %v1989, 0
    %1996 = vmatprep.subr.bf16.mxu0 0
    %1997 = vmatpush1.bf16.msra.mxu0 0
    %1998 = vmatprep.subr.bf16.mxu0 0
    %1999 = vmatpush1.bf16.msra.mxu0 0
    %2000 = vmatprep.subr.bf16.mxu0 0
    %2001 = vmatpush1.bf16.msra.mxu0 0
    %2002 = vmatprep.subr.bf16.mxu0 0
    %2003 = vmatpush1.bf16.msra.mxu0 0
    %2004 = vmatprep.subr.bf16.mxu0 0
    %2005 = vmatpush1.bf16.msra.mxu0 0
    %2006 = vmatprep.subr.bf16.mxu0 0
    %2007 = vmatpush1.bf16.msra.mxu0 0
    %2008 = vmatprep.subr.bf16.mxu0 0
    %2009 = vmatpush1.bf16.msra.mxu0 0
    %2010 = vmatprep.subr.bf16.mxu0 0
    %2011 = vmatpush1.bf16.msra.mxu0 %v1994
    %2012 = vmatprep.subr.bf16.mxu0 0
    %2013 = vmatpush2.bf16.msra.mxu0 0
    %2014 = vmatprep.subr.bf16.mxu0 0
    %2015 = vmatpush2.bf16.msra.mxu0 0
    %2016 = vmatprep.subr.bf16.mxu0 0
    %2017 = vmatpush2.bf16.msra.mxu0 0
    %2018 = vmatprep.subr.bf16.mxu0 0
    %2019 = vmatpush2.bf16.msra.mxu0 0
    %2020 = vmatprep.subr.bf16.mxu0 0
    %2021 = vmatpush2.bf16.msra.mxu0 0
    %2022 = vmatprep.subr.bf16.mxu0 0
    %2023 = vmatpush2.bf16.msra.mxu0 0
    %2024 = vmatprep.subr.bf16.mxu0 0
    %2025 = vmatpush2.bf16.msra.mxu0 0
    %2026 = vmatprep.subr.bf16.mxu0 0
    %2027 = vmatpush2.bf16.msra.mxu0 0
    %2028 = vmatprep.mubr.bf16.mxu0 0
    %2029 = vmatmul.mubr.bf16.gmra.mxu0 %v1991
    %v2030 = vpop.f32.mrf.mxu0
    %v2031 = vadd.f32 0.0, %v2030
    %v2032 = vpop.f32.mrf.mxu0
    %v2033 = vpop.f32.mrf.mxu0
    %v2034 = vadd.f32 0.0, %v2033
    %v2035 = vpop.f32.mrf.mxu0
    %2036 = vdwg.mxu0
    %v2037 = vsel %vm348, %v2031, -inf
    %2038 = vmax.xlane.f32.xlu0 %v2037
    %v2039 = vpop.xlane.xlu0 %2038
    %v2040 = vsel %vm348, %v2034, -inf
    %2041 = vmax.xlane.f32.xlu0 %v2040
    %v2042 = vpop.xlane.xlu0 %2041
    %v2043 = vsub.f32 %v2031, %v2039
    %v2044 = vsub.f32 %v2034, %v2042
    %v2045 = vmul.f32 %v2043, 1.442695
    %v2046 = vpow.pop %v2045
    %v2047 = vmul.f32 %v2044, 1.442695
    %v2048 = vpow.pop %v2047
    %v2049 = vsel %vm348, %v2046, 0.0
    %2050 = vadd.xlane.f32.xlu0 %v2049
    %v2051 = vpop.xlane.xlu0 %2050
    %v2052 = vsel %vm348, %v2048, 0.0
    %2053 = vadd.xlane.f32.xlu0 %v2052
    %v2054 = vpop.xlane.xlu0 %2053
    %v2055 = vrcp.pop %v2051
    %v2056 = vrcp.pop %v2054
    %v2057 = vmul.f32 %v2046, %v2055
    %v2058 = vmul.f32 %v2048, %v2056
    %v2059 = vpack.c.bf16 %v2058, %v2057
    %2060 = vrot.lane.b32.xlu0 %v298, 24
    %v2061 = vpop.permute.xlu0 %2060
    %v2064 = vsel %vm348, %v2059, 0
    %2066 = vmatprep.subr.bf16.mxu0 0
    %2067 = vmatpush1.bf16.msra.mxu0 0
    %2068 = vmatprep.subr.bf16.mxu0 0
    %2069 = vmatpush1.bf16.msra.mxu0 0
    %2070 = vmatprep.subr.bf16.mxu0 0
    %2071 = vmatpush1.bf16.msra.mxu0 0
    %2072 = vmatprep.subr.bf16.mxu0 0
    %2073 = vmatpush1.bf16.msra.mxu0 0
    %2074 = vmatprep.subr.bf16.mxu0 0
    %2075 = vmatpush1.bf16.msra.mxu0 0
    %2076 = vmatprep.subr.bf16.mxu0 0
    %2077 = vmatpush1.bf16.msra.mxu0 0
    %2078 = vmatprep.subr.bf16.mxu0 0
    %2079 = vmatpush1.bf16.msra.mxu0 0
    %2080 = vmatprep.subr.bf16.mxu0 0
    %2081 = vmatpush1.bf16.msra.mxu0 %v2061
    %2082 = vmatprep.subr.bf16.mxu0 0
    %2083 = vmatpush2.bf16.msra.mxu0 0
    %2084 = vmatprep.subr.bf16.mxu0 0
    %2085 = vmatpush2.bf16.msra.mxu0 0
    %2086 = vmatprep.subr.bf16.mxu0 0
    %2087 = vmatpush2.bf16.msra.mxu0 0
    %2088 = vmatprep.subr.bf16.mxu0 0
    %2089 = vmatpush2.bf16.msra.mxu0 0
    %2090 = vmatprep.subr.bf16.mxu0 0
    %2091 = vmatpush2.bf16.msra.mxu0 0
    %2092 = vmatprep.subr.bf16.mxu0 0
    %2093 = vmatpush2.bf16.msra.mxu0 0
    %2094 = vmatprep.subr.bf16.mxu0 0
    %2095 = vmatpush2.bf16.msra.mxu0 0
    %2096 = vmatprep.subr.bf16.mxu0 0
    %2097 = vmatpush2.bf16.msra.mxu0 0
    %2098 = vmatprep.mubr.bf16.mxu0 0
    %2099 = vmatmul.mubr.bf16.gmra.mxu0 %v2064
    %v2100 = vpop.f32.mrf.mxu0
    %v2101 = vadd.f32 0.0, %v2100
    %v2102 = vpop.f32.mrf.mxu0
    %v2103 = vpop.f32.mrf.mxu0
    %v2104 = vadd.f32 0.0, %v2103
    %v2105 = vpop.f32.mrf.mxu0
    %2106 = vdwg.mxu0
    %2109 = vrot.lane.b32.xlu0 %v2101, 48
    %v2110 = vpop.permute.xlu0 %2109
    %2111 = vrot.lane.b32.xlu0 %v2104, 48
    %v2112 = vpop.permute.xlu0 %2111
    %2115 = vst.msk [vmem:[#allocation2 + $0x10] sm:$0xff] %vm1205, %v2110
    %2116 = vst.msk [vmem:[#allocation2 + $0x18] sm:$0xff] %vm1205, %v2112
    %v2117 = vld [vmem:[#allocation2] sm:$0xff]
    %v2118 = vld [vmem:[#allocation2 + $0x8] sm:$0xff]
    %v2119 = vld [vmem:[#allocation2 + $0x10] sm:$0xff]
    %v2120 = vld [vmem:[#allocation2 + $0x18] sm:$0xff]
    %v2121 = vpack.c.bf16 %v2118, %v2117
    %v2122 = vpack.c.bf16 %v2120, %v2119
    %v2123 = vld [vmem:[%s5] sm:$0xf]
    %v2124 = vld [vmem:[%s5 + $0x4] sm:$0xf]
    %v2125 = vld [vmem:[%s5 + $0x8] sm:$0xf]
    %v2126 = vld [vmem:[%s5 + $0xc] sm:$0xf]
    %v2127 = vld [vmem:[%s5 + $0x10] sm:$0xf]
    %v2128 = vld [vmem:[%s5 + $0x14] sm:$0xf]
    %v2129 = vld [vmem:[%s5 + $0x18] sm:$0xf]
    %v2130 = vld [vmem:[%s6] sm:$0x1]
    %v2132 = vlaneseq
    %v2133 = vshrl.u32 %v2132, 7
    %v2134 = vsub.s32 0, %v2133
    %v2135 = vrot.slane %v2130, %v2134
    %v2144 = vunpack.c.l.b16 %v2123
    %v2145 = vunpack.c.l.b16 %v2124
    %v2146 = vunpack.c.l.b16 %v2125
    %v2147 = vunpack.c.l.b16 %v2126
    %v2148 = vunpack.c.l.b16 %v2127
    %v2149 = vunpack.c.l.b16 %v2128
    %v2150 = vunpack.c.l.b16 %v2129
    %v2151 = vpack.c.b16 %v2145, %v2144
    %v2152 = vpack.c.b16 %v2147, %v2146
    %v2153 = vpack.c.b16 %v2149, %v2148
    %v2154 = vpack.c.b16 %v2150, %v2150
    %vm2158 = vcmask 457728
    %v2160 = vsel %vm2158, %v2121, 0
    %v2163 = vsel %vm2158, %v2122, 0
    %v2166 = vsel %vm303, %v2154, 0
    %2168 = vmatprep.subr.bf16.mxu0 0
    %2169 = vmatpush1.bf16.msra.mxu0 0
    %2170 = vmatprep.subr.bf16.mxu0 0
    %2171 = vmatpush1.bf16.msra.mxu0 0
    %2172 = vmatprep.subr.bf16.mxu0 0
    %2173 = vmatpush1.bf16.msra.mxu0 0
    %2174 = vmatprep.subr.bf16.mxu0 0
    %2175 = vmatpush1.bf16.msra.mxu0 0
    %2176 = vmatprep.subr.bf16.mxu0 0
    %2177 = vmatpush1.bf16.msra.mxu0 %v2166
    %2178 = vmatprep.subr.bf16.mxu0 0
    %2179 = vmatpush1.bf16.msra.mxu0 %v2153
    %2180 = vmatprep.subr.bf16.mxu0 0
    %2181 = vmatpush1.bf16.msra.mxu0 %v2152
    %2182 = vmatprep.subr.bf16.mxu0 0
    %2183 = vmatpush1.bf16.msra.mxu0 %v2151
    %2184 = vmatprep.subr.bf16.mxu0 0
    %2185 = vmatpush2.bf16.msra.mxu0 0
    %2186 = vmatprep.subr.bf16.mxu0 0
    %2187 = vmatpush2.bf16.msra.mxu0 0
    %2188 = vmatprep.subr.bf16.mxu0 0
    %2189 = vmatpush2.bf16.msra.mxu0 0
    %2190 = vmatprep.subr.bf16.mxu0 0
    %2191 = vmatpush2.bf16.msra.mxu0 0
    %2192 = vmatprep.subr.bf16.mxu0 0
    %2193 = vmatpush2.bf16.msra.mxu0 0
    %2194 = vmatprep.subr.bf16.mxu0 0
    %2195 = vmatpush2.bf16.msra.mxu0 0
    %2196 = vmatprep.subr.bf16.mxu0 0
    %2197 = vmatpush2.bf16.msra.mxu0 0
    %2198 = vmatprep.subr.bf16.mxu0 0
    %2199 = vmatpush2.bf16.msra.mxu0 0
    %2200 = vmatprep.mubr.bf16.mxu0 0
    %2201 = vmatmul.mubr.bf16.gmra.mxu0 %v2160
    %v2202 = vpop.f32.mrf.mxu0
    %v2203 = vadd.f32 %v2135, %v2202
    %v2204 = vpop.f32.mrf.mxu0
    %v2205 = vpop.f32.mrf.mxu0
    %v2206 = vadd.f32 %v2135, %v2205
    %v2207 = vpop.f32.mrf.mxu0
    %2208 = vmatprep.mubr.bf16.mxu0 0
    %2209 = vmatmul.mubr.bf16.gmra.mxu0 %v2163
    %v2210 = vpop.f32.mrf.mxu0
    %v2211 = vadd.f32 %v2135, %v2210
    %v2212 = vpop.f32.mrf.mxu0
    %v2213 = vpop.f32.mrf.mxu0
    %v2214 = vadd.f32 %v2135, %v2213
    %v2215 = vpop.f32.mrf.mxu0
    %2216 = vdwg.mxu0
    %v2217 = vmax.f32 %v2203, 0.0
    %v2218 = vmax.f32 %v2206, 0.0
    %v2219 = vmax.f32 %v2211, 0.0
    %v2220 = vmax.f32 %v2214, 0.0
    %2221 = vxpose.xlu0.b32.start [1/16] %v2217, 128
    %2222 = vxpose.xlu0.b32.cont [2/16] %v2218, 128
    %2223 = vxpose.xlu0.b32.cont [3/16] %v2219, 128
    %2224 = vxpose.xlu0.b32.cont [4/16] %v2220, 128
    %2225 = vxpose.xlu0.b32.cont [5/16] 0.0, 128
    %2226 = vxpose.xlu0.b32.cont [6/16] 0.0, 128
    %2227 = vxpose.xlu0.b32.cont [7/16] 0.0, 128
    %2228 = vxpose.xlu0.b32.cont [8/16] 0.0, 128
    %2229 = vxpose.xlu0.b32.cont [9/16] 0.0, 128
    %2230 = vxpose.xlu0.b32.cont [10/16] 0.0, 128
    %2231 = vxpose.xlu0.b32.cont [11/16] 0.0, 128
    %2232 = vxpose.xlu0.b32.cont [12/16] 0.0, 128
    %2233 = vxpose.xlu0.b32.cont [13/16] 0.0, 128
    %2234 = vxpose.xlu0.b32.cont [14/16] 0.0, 128
    %2235 = vxpose.xlu0.b32.cont [15/16] 0.0, 128
    %2236 = vxpose.xlu0.b32.end [16/16] 0.0, 128
    %v2237 = vpop.trf.xlu0
    %v2238 = vpop.trf.xlu0
    %v2239 = vpop.trf.xlu0
    %v2240 = vpop.trf.xlu0
    %v2241 = vpop.trf.xlu0
    %v2242 = vpop.trf.xlu0
    %v2243 = vpop.trf.xlu0
    %v2244 = vpop.trf.xlu0
    %v2245 = vpop.trf.xlu0
    %v2246 = vpop.trf.xlu0
    %v2247 = vpop.trf.xlu0
    %v2248 = vpop.trf.xlu0
    %v2249 = vpop.trf.xlu0
    %v2250 = vpop.trf.xlu0
    %v2251 = vpop.trf.xlu0
    %v2252 = vpop.trf.xlu0
    %2253 = vst.msk [vmem:[#allocation3] sm:$0xff] %vm111, %v2237
    %2254 = vst.msk [vmem:[#allocation3 + $0x8] sm:$0xff] %vm111, %v2238
    %2255 = vst.msk [vmem:[#allocation3 + $0x10] sm:$0xff] %vm111, %v2239
    %2256 = vst.msk [vmem:[#allocation3 + $0x18] sm:$0xff] %vm111, %v2240
    // Predicated region
    $region30: #{tpu_custom_call.1} parent=1 // pred_check
      _
    $region31: #{tpu_custom_call.1} parent=1 // pred_check_branch
      %2258 = sbr.rel (0) target = $region33
    $region32: #{tpu_custom_call.1} parent=1 // pred_region
      %s2260 = ssub.s32 512, 512
      %2261 = vsyncadd [#allocation4], %s2260
      %s2262 = sshll.u32 [#allocation3], 4
      %s2263 = int_to_ptr.vmem [resolvable:$true] %s2262
      %2268 = dma.vmem_to_hbm [thread:$0]  %s2263, 512, %s7, [#allocation4], 128, 128, 8
    $region33: #{tpu_custom_call.1} parent=1 // pred_fallthru
      _
    // Predicated region
    $region34: #{tpu_custom_call.1} parent=1 // pred_check
      _
    $region35: #{tpu_custom_call.1} parent=1 // pred_check_branch
      %2270 = sbr.rel (0) target = $region37
    $region36: #{tpu_custom_call.1} parent=1 // pred_region
      %2271 = dma.done [#allocation4], 512
    $region37: #{tpu_custom_call.1} parent=1 // pred_fallthru
      _
    %2272 = vsyncpa [#allocation4], 1

</llo_original>
